<compile_context>
chip_gen: v7x
topology: tpu7x:2x2x1
jax: 0.10.0
libtpu: 0.0.40
codegen_flags: <defaults>
</compile_context>

<pallas_src>
import functools

import jax
import jax.numpy as jnp
import numpy as np
from jax import lax
from jax.experimental import pallas as pl
from jax.experimental.pallas import tpu as pltpu

KSIZE = 5
PAD = KSIZE // 2          # 2
NWIN = KSIZE * KSIZE      # 25


# ----------------------------------------------------------------------------------------------
# Median-of-25 via a forgetful (streaming) min/max selection network.
# ----------------------------------------------------------------------------------------------
def _cmpswap(vals, i, j):
    a = vals[i]
    b = vals[j]
    vals[i] = jnp.minimum(a, b)
    vals[j] = jnp.maximum(a, b)


def _drop_min_max(vals):
    """Comparator (min/max only) network that removes one minimum-valued and one maximum-valued
    element from `vals` (len >= 3) and returns the remaining elements (multiset preserving).
    Cost: ceil(3*s/2) - 2 compare-exchanges for s = len(vals)."""
    s = len(vals)
    vals = list(vals)
    # pairwise compare-exchange: pair-mins at even slots, pair-maxes at odd slots
    for i in range(0, s - 1, 2):
        _cmpswap(vals, i, i + 1)
    mins = list(range(0, s - 1, 2))
    maxs = list(range(1, s, 2))
    if s % 2 == 1:            # unpaired last element is both a min and a max candidate
        mins.append(s - 1)
        maxs.append(s - 1)
    for c in mins[1:]:        # pull global min into slot mins[0]
        _cmpswap(vals, mins[0], c)
    for c in maxs[:-1]:       # pull global max into slot maxs[-1]
        _cmpswap(vals, c, maxs[-1])
    dead = (mins[0], maxs[-1])
    return [v for i, v in enumerate(vals) if i not in dead]


def _median25(get_view):
    """Exact median of 25 values via forgetful selection: start with 14 values, repeatedly drop
    the current min and max (neither can be the median) and ingest the next value.  At most 14
    window values are live at once; total ~132 compare-exchanges (~264 vmin/vmax ops)."""
    work = [get_view(i) for i in range(14)]
    nxt = 14
    while len(work) > 3 or nxt < NWIN:
        work = _drop_min_max(work)
        if nxt < NWIN:
            work.append(get_view(nxt))
            nxt += 1
    (med,) = _drop_min_max(work)   # median of the remaining 3
    return med


# ----------------------------------------------------------------------------------------------
# Kernel
# ----------------------------------------------------------------------------------------------
def _smoothing_kernel(k_ref, strip_ref, out_ref, *, h_total):
    """k_ref:     SMEM (5,) f32 separable (1-D, normalized) Gaussian weights.
       strip_ref: VMEM (1, 1, TH+8, W+8) f32: one row strip of the padded image
                  (2 dummy + 2 reflect + TH rows + 2 reflect/next-strip + 2 dummy; same in cols).
       out_ref:   VMEM (1, TH, W) f32 output rows of this strip.
    """
    th = out_ref.shape[1]
    w = out_ref.shape[2]
    the = th + 2 * PAD        # extended (median) rows incl. Gaussian halo
    we = w + 2 * PAD          # extended (median) cols incl. Gaussian halo
    s_idx = pl.program_id(1)

    # 25 shifted views of the strip; loaded lazily so that <= 14 stay live at a time.
    def get_view(i):
        dy, dx = i // KSIZE, i % KSIZE
        return strip_ref[0, 0, pl.ds(dy, the), pl.ds(dx, we)]

    med = _median25(get_view)                    # (the, we) median image on strip + 2-px halo

    # The Gaussian conv uses ZERO padding of the median image: zero every extended row/col that
    # falls outside the real image (their median values came from dummy halo data).
    row0 = s_idx * th - PAD                      # global row of extended-median row 0
    rows = lax.broadcasted_iota(jnp.int32, (the, we), 0) + row0
    cols = lax.broadcasted_iota(jnp.int32, (the, we), 1)
    valid = (rows >= 0) & (rows < h_total) & (cols >= PAD) & (cols < PAD + w)
    med = jnp.where(valid, med, 0.0)

    # Separable 5x5 Gaussian: vertical then horizontal 1-D passes (10 MACs instead of 25).
    vert = k_ref[0] * med[0:th, :]
    for dy in range(1, KSIZE):
        vert = vert + k_ref[dy] * med[dy:dy + th, :]
    out = k_ref[0] * vert[:, 0:w]
    for dx in range(1, KSIZE):
        out = out + k_ref[dx] * vert[:, dx:dx + w]

    out_ref[0] = out


# ----------------------------------------------------------------------------------------------
# Wrapper / parameters
# ----------------------------------------------------------------------------------------------
def gaussian_kernel_1d(sigma):
    """1-D normalized Gaussian; outer(k1d, k1d) equals the module's normalized 5x5 kernel."""
    coords = jnp.arange(KSIZE, dtype=jnp.float32) - (KSIZE // 2)
    e = jnp.exp(-(coords ** 2) / (2.0 * sigma ** 2))
    return e / jnp.sum(e)


def gaussian_kernel_2d(sigma):
    """Matches LearnableGaussianFilter.gaussian_kernel (normalized 5x5 Gaussian)."""
    coords = jnp.arange(KSIZE, dtype=jnp.float32) - (KSIZE // 2)
    yy, xx = jnp.meshgrid(coords, coords, indexing="ij")
    k = (1.0 / (2.0 * jnp.pi * sigma ** 2)) * jnp.exp(-(xx ** 2 + yy ** 2) / (2.0 * sigma ** 2))
    return k / jnp.sum(k)


@functools.partial(jax.jit, static_argnames=("block_rows",))
def smoothing_layer(img, sigma, *, block_rows=8):
    B, H, W = img.shape
    th = block_rows if H % block_rows == 0 else H        # row-strip height
    ns = H // th

    imgf = img.astype(jnp.float32)
    # Reflect pad (median-filter padding), then 2 extra dummy rows/cols per side; the dummy region
    # only feeds median outputs that are masked to zero in-kernel (Gaussian zero padding).
    imgp = jnp.pad(imgf, ((0, 0), (PAD, PAD), (PAD, PAD)), mode="reflect")
    padded = jnp.pad(imgp, ((0, 0), (PAD, PAD), (PAD, PAD)))
    # Overlapping row strips with a 4-row halo on each side: (B, ns, th + 8, W + 8).
    strips = jnp.stack(
        [padded[:, s * th: s * th + th + 4 * PAD, :] for s in range(ns)], axis=1)

    k1d = gaussian_kernel_1d(sigma)

    the, we = th + 2 * PAD, W + 2 * PAD
    # ~264 min/max (median) + ~30 (mask + separable Gaussian) ops per extended pixel.
    flops = int(300 * B * ns * the * we)
    bytes_accessed = int(4 * (B * ns * (th + 4 * PAD) * (W + 4 * PAD) + B * H * W + KSIZE))

    out = pl.pallas_call(
        functools.partial(_smoothing_kernel, h_total=H),
        out_shape=jax.ShapeDtypeStruct((B, H, W), jnp.float32),
        grid=(B, ns),
        in_specs=[
            pl.BlockSpec(memory_space=pltpu.MemorySpace.SMEM),                        # (5,) weights
            pl.BlockSpec((1, 1, th + 4 * PAD, W + 4 * PAD), lambda b, s: (b, s, 0, 0)),
        ],
        out_specs=pl.BlockSpec((1, th, W), lambda b, s: (b, s, 0)),
        compiler_params=pltpu.CompilerParams(
            dimension_semantics=("parallel", "parallel")),
        cost_estimate=pl.CostEstimate(
            flops=flops, transcendentals=0, bytes_accessed=bytes_accessed),
    )(k1d, strips)
    return out


# ----------------------------------------------------------------------------------------------
# Pure-JAX reference mirroring the PyTorch forward (full 2-D Gaussian kernel).
# ----------------------------------------------------------------------------------------------
def smoothing_layer_ref(img, sigma):
    B, H, W = img.shape
    imgp = jnp.pad(img, ((0, 0), (PAD, PAD), (PAD, PAD)), mode="reflect")
    wins = jnp.stack(
        [imgp[:, dy:dy + H, dx:dx + W] for dy in range(KSIZE) for dx in range(KSIZE)],
        axis=-1)
    med = jnp.median(wins, axis=-1)
    medp = jnp.pad(med, ((0, 0), (PAD, PAD), (PAD, PAD)))
    k = gaussian_kernel_2d(sigma)
    out = jnp.zeros((B, H, W), jnp.float32)
    for dy in range(KSIZE):
        for dx in range(KSIZE):
            out = out + k[dy, dx] * medp[:, dy:dy + H, dx:dx + W]
    return out


if __name__ == "__main__":
    key = jax.random.PRNGKey(0)
    B, H, W = 2, 16, 16
    img = jax.random.normal(key, (B, H, W), dtype=jnp.float32)

    # Deterministic parameter init (module __init__: init_sigma = 4.0).
    sigma = jnp.float32(4.0)

    out = smoothing_layer(img, sigma, block_rows=8)   # 2 row strips per image -> grid (2, 2)
    out = jax.block_until_ready(out)

    ref = smoothing_layer_ref(img, sigma)
    np.testing.assert_allclose(np.asarray(out), np.asarray(ref), rtol=1e-5, atol=1e-5)

    print("KERNEL_OK")
</pallas_src>

<mosaic_0001>
module attributes {stable_mosaic.version = 11 : i64} {
  func.func @_smoothing_kernel(%arg0: i32, %arg1: i32, %arg2: memref<5xf32, #tpu.memory_space<smem>>, %arg3: memref<1x1x16x24xf32, #tpu.memory_space<vmem>>, %arg4: memref<1x8x16xf32, #tpu.memory_space<vmem>>) attributes {dimension_semantics = [#tpu.dimension_semantics<parallel>, #tpu.dimension_semantics<parallel>], iteration_bounds = array<i64: 2, 2>, scalar_prefetch = 0 : i64, scratch_operands = 0 : i64, tpu.core_type = #tpu.core_type<tc>, window_params = [{transform_indices = @transform_0, window_bounds = array<i64: 5>}, {transform_indices = @transform_1, window_bounds = array<i64: 1, 1, 16, 24>}, {transform_indices = @transform_2, window_bounds = array<i64: 1, 8, 16>}]} {
    %c0 = arith.constant 0 : index
    %c0_0 = arith.constant 0 : index
    %c0_1 = arith.constant 0 : index
    %c0_2 = arith.constant 0 : index
    %0 = vector.load %arg3[%c0, %c0_0, %c0_1, %c0_2] : memref<1x1x16x24xf32, #tpu.memory_space<vmem>>, vector<1x1x12x20xf32>
    %1 = vector.shape_cast %0 : vector<1x1x12x20xf32> to vector<12x20xf32>
    %c0_3 = arith.constant 0 : index
    %c0_4 = arith.constant 0 : index
    %c0_5 = arith.constant 0 : index
    %c1 = arith.constant 1 : index
    %2 = vector.load %arg3[%c0_3, %c0_4, %c0_5, %c1] : memref<1x1x16x24xf32, #tpu.memory_space<vmem>>, vector<1x1x12x20xf32>
    %3 = vector.shape_cast %2 : vector<1x1x12x20xf32> to vector<12x20xf32>
    %c0_6 = arith.constant 0 : index
    %c0_7 = arith.constant 0 : index
    %c0_8 = arith.constant 0 : index
    %c2 = arith.constant 2 : index
    %4 = vector.load %arg3[%c0_6, %c0_7, %c0_8, %c2] : memref<1x1x16x24xf32, #tpu.memory_space<vmem>>, vector<1x1x12x20xf32>
    %5 = vector.shape_cast %4 : vector<1x1x12x20xf32> to vector<12x20xf32>
    %c0_9 = arith.constant 0 : index
    %c0_10 = arith.constant 0 : index
    %c0_11 = arith.constant 0 : index
    %c3 = arith.constant 3 : index
    %6 = vector.load %arg3[%c0_9, %c0_10, %c0_11, %c3] : memref<1x1x16x24xf32, #tpu.memory_space<vmem>>, vector<1x1x12x20xf32>
    %7 = vector.shape_cast %6 : vector<1x1x12x20xf32> to vector<12x20xf32>
    %c0_12 = arith.constant 0 : index
    %c0_13 = arith.constant 0 : index
    %c0_14 = arith.constant 0 : index
    %c4 = arith.constant 4 : index
    %8 = vector.load %arg3[%c0_12, %c0_13, %c0_14, %c4] : memref<1x1x16x24xf32, #tpu.memory_space<vmem>>, vector<1x1x12x20xf32>
    %9 = vector.shape_cast %8 : vector<1x1x12x20xf32> to vector<12x20xf32>
    %c0_15 = arith.constant 0 : index
    %c0_16 = arith.constant 0 : index
    %c1_17 = arith.constant 1 : index
    %c0_18 = arith.constant 0 : index
    %10 = vector.load %arg3[%c0_15, %c0_16, %c1_17, %c0_18] : memref<1x1x16x24xf32, #tpu.memory_space<vmem>>, vector<1x1x12x20xf32>
    %11 = vector.shape_cast %10 : vector<1x1x12x20xf32> to vector<12x20xf32>
    %c0_19 = arith.constant 0 : index
    %c0_20 = arith.constant 0 : index
    %c1_21 = arith.constant 1 : index
    %c1_22 = arith.constant 1 : index
    %12 = vector.load %arg3[%c0_19, %c0_20, %c1_21, %c1_22] : memref<1x1x16x24xf32, #tpu.memory_space<vmem>>, vector<1x1x12x20xf32>
    %13 = vector.shape_cast %12 : vector<1x1x12x20xf32> to vector<12x20xf32>
    %c0_23 = arith.constant 0 : index
    %c0_24 = arith.constant 0 : index
    %c1_25 = arith.constant 1 : index
    %c2_26 = arith.constant 2 : index
    %14 = vector.load %arg3[%c0_23, %c0_24, %c1_25, %c2_26] : memref<1x1x16x24xf32, #tpu.memory_space<vmem>>, vector<1x1x12x20xf32>
    %15 = vector.shape_cast %14 : vector<1x1x12x20xf32> to vector<12x20xf32>
    %c0_27 = arith.constant 0 : index
    %c0_28 = arith.constant 0 : index
    %c1_29 = arith.constant 1 : index
    %c3_30 = arith.constant 3 : index
    %16 = vector.load %arg3[%c0_27, %c0_28, %c1_29, %c3_30] : memref<1x1x16x24xf32, #tpu.memory_space<vmem>>, vector<1x1x12x20xf32>
    %17 = vector.shape_cast %16 : vector<1x1x12x20xf32> to vector<12x20xf32>
    %c0_31 = arith.constant 0 : index
    %c0_32 = arith.constant 0 : index
    %c1_33 = arith.constant 1 : index
    %c4_34 = arith.constant 4 : index
    %18 = vector.load %arg3[%c0_31, %c0_32, %c1_33, %c4_34] : memref<1x1x16x24xf32, #tpu.memory_space<vmem>>, vector<1x1x12x20xf32>
    %19 = vector.shape_cast %18 : vector<1x1x12x20xf32> to vector<12x20xf32>
    %c0_35 = arith.constant 0 : index
    %c0_36 = arith.constant 0 : index
    %c2_37 = arith.constant 2 : index
    %c0_38 = arith.constant 0 : index
    %20 = vector.load %arg3[%c0_35, %c0_36, %c2_37, %c0_38] : memref<1x1x16x24xf32, #tpu.memory_space<vmem>>, vector<1x1x12x20xf32>
    %21 = vector.shape_cast %20 : vector<1x1x12x20xf32> to vector<12x20xf32>
    %c0_39 = arith.constant 0 : index
    %c0_40 = arith.constant 0 : index
    %c2_41 = arith.constant 2 : index
    %c1_42 = arith.constant 1 : index
    %22 = vector.load %arg3[%c0_39, %c0_40, %c2_41, %c1_42] : memref<1x1x16x24xf32, #tpu.memory_space<vmem>>, vector<1x1x12x20xf32>
    %23 = vector.shape_cast %22 : vector<1x1x12x20xf32> to vector<12x20xf32>
    %c0_43 = arith.constant 0 : index
    %c0_44 = arith.constant 0 : index
    %c2_45 = arith.constant 2 : index
    %c2_46 = arith.constant 2 : index
    %24 = vector.load %arg3[%c0_43, %c0_44, %c2_45, %c2_46] : memref<1x1x16x24xf32, #tpu.memory_space<vmem>>, vector<1x1x12x20xf32>
    %25 = vector.shape_cast %24 : vector<1x1x12x20xf32> to vector<12x20xf32>
    %c0_47 = arith.constant 0 : index
    %c0_48 = arith.constant 0 : index
    %c2_49 = arith.constant 2 : index
    %c3_50 = arith.constant 3 : index
    %26 = vector.load %arg3[%c0_47, %c0_48, %c2_49, %c3_50] : memref<1x1x16x24xf32, #tpu.memory_space<vmem>>, vector<1x1x12x20xf32>
    %27 = vector.shape_cast %26 : vector<1x1x12x20xf32> to vector<12x20xf32>
    %28 = arith.minimumf %1, %3 : vector<12x20xf32>
    %29 = arith.maximumf %1, %3 : vector<12x20xf32>
    %30 = arith.minimumf %5, %7 : vector<12x20xf32>
    %31 = arith.maximumf %5, %7 : vector<12x20xf32>
    %32 = arith.minimumf %9, %11 : vector<12x20xf32>
    %33 = arith.maximumf %9, %11 : vector<12x20xf32>
    %34 = arith.minimumf %13, %15 : vector<12x20xf32>
    %35 = arith.maximumf %13, %15 : vector<12x20xf32>
    %36 = arith.minimumf %17, %19 : vector<12x20xf32>
    %37 = arith.maximumf %17, %19 : vector<12x20xf32>
    %38 = arith.minimumf %21, %23 : vector<12x20xf32>
    %39 = arith.maximumf %21, %23 : vector<12x20xf32>
    %40 = arith.minimumf %25, %27 : vector<12x20xf32>
    %41 = arith.maximumf %25, %27 : vector<12x20xf32>
    %42 = arith.minimumf %28, %30 : vector<12x20xf32>
    %43 = arith.maximumf %28, %30 : vector<12x20xf32>
    %44 = arith.minimumf %42, %32 : vector<12x20xf32>
    %45 = arith.maximumf %42, %32 : vector<12x20xf32>
    %46 = arith.minimumf %44, %34 : vector<12x20xf32>
    %47 = arith.maximumf %44, %34 : vector<12x20xf32>
    %48 = arith.minimumf %46, %36 : vector<12x20xf32>
    %49 = arith.maximumf %46, %36 : vector<12x20xf32>
    %50 = arith.minimumf %48, %38 : vector<12x20xf32>
    %51 = arith.maximumf %48, %38 : vector<12x20xf32>
    %52 = arith.maximumf %50, %40 : vector<12x20xf32>
    %53 = arith.minimumf %29, %41 : vector<12x20xf32>
    %54 = arith.maximumf %29, %41 : vector<12x20xf32>
    %55 = arith.minimumf %31, %54 : vector<12x20xf32>
    %56 = arith.maximumf %31, %54 : vector<12x20xf32>
    %57 = arith.minimumf %33, %56 : vector<12x20xf32>
    %58 = arith.maximumf %33, %56 : vector<12x20xf32>
    %59 = arith.minimumf %35, %58 : vector<12x20xf32>
    %60 = arith.maximumf %35, %58 : vector<12x20xf32>
    %61 = arith.minimumf %37, %60 : vector<12x20xf32>
    %62 = arith.maximumf %37, %60 : vector<12x20xf32>
    %63 = arith.minimumf %39, %62 : vector<12x20xf32>
    %c0_51 = arith.constant 0 : index
    %c0_52 = arith.constant 0 : index
    %c2_53 = arith.constant 2 : index
    %c4_54 = arith.constant 4 : index
    %64 = vector.load %arg3[%c0_51, %c0_52, %c2_53, %c4_54] : memref<1x1x16x24xf32, #tpu.memory_space<vmem>>, vector<1x1x12x20xf32>
    %65 = vector.shape_cast %64 : vector<1x1x12x20xf32> to vector<12x20xf32>
    %66 = arith.minimumf %53, %43 : vector<12x20xf32>
    %67 = arith.maximumf %53, %43 : vector<12x20xf32>
    %68 = arith.minimumf %55, %45 : vector<12x20xf32>
    %69 = arith.maximumf %55, %45 : vector<12x20xf32>
    %70 = arith.minimumf %57, %47 : vector<12x20xf32>
    %71 = arith.maximumf %57, %47 : vector<12x20xf32>
    %72 = arith.minimumf %59, %49 : vector<12x20xf32>
    %73 = arith.maximumf %59, %49 : vector<12x20xf32>
    %74 = arith.minimumf %61, %51 : vector<12x20xf32>
    %75 = arith.maximumf %61, %51 : vector<12x20xf32>
    %76 = arith.minimumf %63, %52 : vector<12x20xf32>
    %77 = arith.maximumf %63, %52 : vector<12x20xf32>
    %78 = arith.minimumf %66, %68 : vector<12x20xf32>
    %79 = arith.maximumf %66, %68 : vector<12x20xf32>
    %80 = arith.minimumf %78, %70 : vector<12x20xf32>
    %81 = arith.maximumf %78, %70 : vector<12x20xf32>
    %82 = arith.minimumf %80, %72 : vector<12x20xf32>
    %83 = arith.maximumf %80, %72 : vector<12x20xf32>
    %84 = arith.minimumf %82, %74 : vector<12x20xf32>
    %85 = arith.maximumf %82, %74 : vector<12x20xf32>
    %86 = arith.minimumf %84, %76 : vector<12x20xf32>
    %87 = arith.maximumf %84, %76 : vector<12x20xf32>
    %88 = arith.maximumf %86, %65 : vector<12x20xf32>
    %89 = arith.minimumf %67, %88 : vector<12x20xf32>
    %90 = arith.maximumf %67, %88 : vector<12x20xf32>
    %91 = arith.minimumf %69, %90 : vector<12x20xf32>
    %92 = arith.maximumf %69, %90 : vector<12x20xf32>
    %93 = arith.minimumf %71, %92 : vector<12x20xf32>
    %94 = arith.maximumf %71, %92 : vector<12x20xf32>
    %95 = arith.minimumf %73, %94 : vector<12x20xf32>
    %96 = arith.maximumf %73, %94 : vector<12x20xf32>
    %97 = arith.minimumf %75, %96 : vector<12x20xf32>
    %98 = arith.maximumf %75, %96 : vector<12x20xf32>
    %99 = arith.minimumf %77, %98 : vector<12x20xf32>
    %c0_55 = arith.constant 0 : index
    %c0_56 = arith.constant 0 : index
    %c3_57 = arith.constant 3 : index
    %c0_58 = arith.constant 0 : index
    %100 = vector.load %arg3[%c0_55, %c0_56, %c3_57, %c0_58] : memref<1x1x16x24xf32, #tpu.memory_space<vmem>>, vector<1x1x12x20xf32>
    %101 = vector.shape_cast %100 : vector<1x1x12x20xf32> to vector<12x20xf32>
    %102 = arith.minimumf %89, %79 : vector<12x20xf32>
    %103 = arith.maximumf %89, %79 : vector<12x20xf32>
    %104 = arith.minimumf %91, %81 : vector<12x20xf32>
    %105 = arith.maximumf %91, %81 : vector<12x20xf32>
    %106 = arith.minimumf %93, %83 : vector<12x20xf32>
    %107 = arith.maximumf %93, %83 : vector<12x20xf32>
    %108 = arith.minimumf %95, %85 : vector<12x20xf32>
    %109 = arith.maximumf %95, %85 : vector<12x20xf32>
    %110 = arith.minimumf %97, %87 : vector<12x20xf32>
    %111 = arith.maximumf %97, %87 : vector<12x20xf32>
    %112 = arith.minimumf %99, %101 : vector<12x20xf32>
    %113 = arith.maximumf %99, %101 : vector<12x20xf32>
    %114 = arith.minimumf %102, %104 : vector<12x20xf32>
    %115 = arith.maximumf %102, %104 : vector<12x20xf32>
    %116 = arith.minimumf %114, %106 : vector<12x20xf32>
    %117 = arith.maximumf %114, %106 : vector<12x20xf32>
    %118 = arith.minimumf %116, %108 : vector<12x20xf32>
    %119 = arith.maximumf %116, %108 : vector<12x20xf32>
    %120 = arith.minimumf %118, %110 : vector<12x20xf32>
    %121 = arith.maximumf %118, %110 : vector<12x20xf32>
    %122 = arith.maximumf %120, %112 : vector<12x20xf32>
    %123 = arith.minimumf %103, %113 : vector<12x20xf32>
    %124 = arith.maximumf %103, %113 : vector<12x20xf32>
    %125 = arith.minimumf %105, %124 : vector<12x20xf32>
    %126 = arith.maximumf %105, %124 : vector<12x20xf32>
    %127 = arith.minimumf %107, %126 : vector<12x20xf32>
    %128 = arith.maximumf %107, %126 : vector<12x20xf32>
    %129 = arith.minimumf %109, %128 : vector<12x20xf32>
    %130 = arith.maximumf %109, %128 : vector<12x20xf32>
    %131 = arith.minimumf %111, %130 : vector<12x20xf32>
    %c0_59 = arith.constant 0 : index
    %c0_60 = arith.constant 0 : index
    %c3_61 = arith.constant 3 : index
    %c1_62 = arith.constant 1 : index
    %132 = vector.load %arg3[%c0_59, %c0_60, %c3_61, %c1_62] : memref<1x1x16x24xf32, #tpu.memory_space<vmem>>, vector<1x1x12x20xf32>
    %133 = vector.shape_cast %132 : vector<1x1x12x20xf32> to vector<12x20xf32>
    %134 = arith.minimumf %123, %115 : vector<12x20xf32>
    %135 = arith.maximumf %123, %115 : vector<12x20xf32>
    %136 = arith.minimumf %125, %117 : vector<12x20xf32>
    %137 = arith.maximumf %125, %117 : vector<12x20xf32>
    %138 = arith.minimumf %127, %119 : vector<12x20xf32>
    %139 = arith.maximumf %127, %119 : vector<12x20xf32>
    %140 = arith.minimumf %129, %121 : vector<12x20xf32>
    %141 = arith.maximumf %129, %121 : vector<12x20xf32>
    %142 = arith.minimumf %131, %122 : vector<12x20xf32>
    %143 = arith.maximumf %131, %122 : vector<12x20xf32>
    %144 = arith.minimumf %134, %136 : vector<12x20xf32>
    %145 = arith.maximumf %134, %136 : vector<12x20xf32>
    %146 = arith.minimumf %144, %138 : vector<12x20xf32>
    %147 = arith.maximumf %144, %138 : vector<12x20xf32>
    %148 = arith.minimumf %146, %140 : vector<12x20xf32>
    %149 = arith.maximumf %146, %140 : vector<12x20xf32>
    %150 = arith.minimumf %148, %142 : vector<12x20xf32>
    %151 = arith.maximumf %148, %142 : vector<12x20xf32>
    %152 = arith.maximumf %150, %133 : vector<12x20xf32>
    %153 = arith.minimumf %135, %152 : vector<12x20xf32>
    %154 = arith.maximumf %135, %152 : vector<12x20xf32>
    %155 = arith.minimumf %137, %154 : vector<12x20xf32>
    %156 = arith.maximumf %137, %154 : vector<12x20xf32>
    %157 = arith.minimumf %139, %156 : vector<12x20xf32>
    %158 = arith.maximumf %139, %156 : vector<12x20xf32>
    %159 = arith.minimumf %141, %158 : vector<12x20xf32>
    %160 = arith.maximumf %141, %158 : vector<12x20xf32>
    %161 = arith.minimumf %143, %160 : vector<12x20xf32>
    %c0_63 = arith.constant 0 : index
    %c0_64 = arith.constant 0 : index
    %c3_65 = arith.constant 3 : index
    %c2_66 = arith.constant 2 : index
    %162 = vector.load %arg3[%c0_63, %c0_64, %c3_65, %c2_66] : memref<1x1x16x24xf32, #tpu.memory_space<vmem>>, vector<1x1x12x20xf32>
    %163 = vector.shape_cast %162 : vector<1x1x12x20xf32> to vector<12x20xf32>
    %164 = arith.minimumf %153, %145 : vector<12x20xf32>
    %165 = arith.maximumf %153, %145 : vector<12x20xf32>
    %166 = arith.minimumf %155, %147 : vector<12x20xf32>
    %167 = arith.maximumf %155, %147 : vector<12x20xf32>
    %168 = arith.minimumf %157, %149 : vector<12x20xf32>
    %169 = arith.maximumf %157, %149 : vector<12x20xf32>
    %170 = arith.minimumf %159, %151 : vector<12x20xf32>
    %171 = arith.maximumf %159, %151 : vector<12x20xf32>
    %172 = arith.minimumf %161, %163 : vector<12x20xf32>
    %173 = arith.maximumf %161, %163 : vector<12x20xf32>
    %174 = arith.minimumf %164, %166 : vector<12x20xf32>
    %175 = arith.maximumf %164, %166 : vector<12x20xf32>
    %176 = arith.minimumf %174, %168 : vector<12x20xf32>
    %177 = arith.maximumf %174, %168 : vector<12x20xf32>
    %178 = arith.minimumf %176, %170 : vector<12x20xf32>
    %179 = arith.maximumf %176, %170 : vector<12x20xf32>
    %180 = arith.maximumf %178, %172 : vector<12x20xf32>
    %181 = arith.minimumf %165, %173 : vector<12x20xf32>
    %182 = arith.maximumf %165, %173 : vector<12x20xf32>
    %183 = arith.minimumf %167, %182 : vector<12x20xf32>
    %184 = arith.maximumf %167, %182 : vector<12x20xf32>
    %185 = arith.minimumf %169, %184 : vector<12x20xf32>
    %186 = arith.maximumf %169, %184 : vector<12x20xf32>
    %187 = arith.minimumf %171, %186 : vector<12x20xf32>
    %c0_67 = arith.constant 0 : index
    %c0_68 = arith.constant 0 : index
    %c3_69 = arith.constant 3 : index
    %c3_70 = arith.constant 3 : index
    %188 = vector.load %arg3[%c0_67, %c0_68, %c3_69, %c3_70] : memref<1x1x16x24xf32, #tpu.memory_space<vmem>>, vector<1x1x12x20xf32>
    %189 = vector.shape_cast %188 : vector<1x1x12x20xf32> to vector<12x20xf32>
    %190 = arith.minimumf %181, %175 : vector<12x20xf32>
    %191 = arith.maximumf %181, %175 : vector<12x20xf32>
    %192 = arith.minimumf %183, %177 : vector<12x20xf32>
    %193 = arith.maximumf %183, %177 : vector<12x20xf32>
    %194 = arith.minimumf %185, %179 : vector<12x20xf32>
    %195 = arith.maximumf %185, %179 : vector<12x20xf32>
    %196 = arith.minimumf %187, %180 : vector<12x20xf32>
    %197 = arith.maximumf %187, %180 : vector<12x20xf32>
    %198 = arith.minimumf %190, %192 : vector<12x20xf32>
    %199 = arith.maximumf %190, %192 : vector<12x20xf32>
    %200 = arith.minimumf %198, %194 : vector<12x20xf32>
    %201 = arith.maximumf %198, %194 : vector<12x20xf32>
    %202 = arith.minimumf %200, %196 : vector<12x20xf32>
    %203 = arith.maximumf %200, %196 : vector<12x20xf32>
    %204 = arith.maximumf %202, %189 : vector<12x20xf32>
    %205 = arith.minimumf %191, %204 : vector<12x20xf32>
    %206 = arith.maximumf %191, %204 : vector<12x20xf32>
    %207 = arith.minimumf %193, %206 : vector<12x20xf32>
    %208 = arith.maximumf %193, %206 : vector<12x20xf32>
    %209 = arith.minimumf %195, %208 : vector<12x20xf32>
    %210 = arith.maximumf %195, %208 : vector<12x20xf32>
    %211 = arith.minimumf %197, %210 : vector<12x20xf32>
    %c0_71 = arith.constant 0 : index
    %c0_72 = arith.constant 0 : index
    %c3_73 = arith.constant 3 : index
    %c4_74 = arith.constant 4 : index
    %212 = vector.load %arg3[%c0_71, %c0_72, %c3_73, %c4_74] : memref<1x1x16x24xf32, #tpu.memory_space<vmem>>, vector<1x1x12x20xf32>
    %213 = vector.shape_cast %212 : vector<1x1x12x20xf32> to vector<12x20xf32>
    %214 = arith.minimumf %205, %199 : vector<12x20xf32>
    %215 = arith.maximumf %205, %199 : vector<12x20xf32>
    %216 = arith.minimumf %207, %201 : vector<12x20xf32>
    %217 = arith.maximumf %207, %201 : vector<12x20xf32>
    %218 = arith.minimumf %209, %203 : vector<12x20xf32>
    %219 = arith.maximumf %209, %203 : vector<12x20xf32>
    %220 = arith.minimumf %211, %213 : vector<12x20xf32>
    %221 = arith.maximumf %211, %213 : vector<12x20xf32>
    %222 = arith.minimumf %214, %216 : vector<12x20xf32>
    %223 = arith.maximumf %214, %216 : vector<12x20xf32>
    %224 = arith.minimumf %222, %218 : vector<12x20xf32>
    %225 = arith.maximumf %222, %218 : vector<12x20xf32>
    %226 = arith.maximumf %224, %220 : vector<12x20xf32>
    %227 = arith.minimumf %215, %221 : vector<12x20xf32>
    %228 = arith.maximumf %215, %221 : vector<12x20xf32>
    %229 = arith.minimumf %217, %228 : vector<12x20xf32>
    %230 = arith.maximumf %217, %228 : vector<12x20xf32>
    %231 = arith.minimumf %219, %230 : vector<12x20xf32>
    %c0_75 = arith.constant 0 : index
    %c0_76 = arith.constant 0 : index
    %c4_77 = arith.constant 4 : index
    %c0_78 = arith.constant 0 : index
    %232 = vector.load %arg3[%c0_75, %c0_76, %c4_77, %c0_78] : memref<1x1x16x24xf32, #tpu.memory_space<vmem>>, vector<1x1x12x20xf32>
    %233 = vector.shape_cast %232 : vector<1x1x12x20xf32> to vector<12x20xf32>
    %234 = arith.minimumf %227, %223 : vector<12x20xf32>
    %235 = arith.maximumf %227, %223 : vector<12x20xf32>
    %236 = arith.minimumf %229, %225 : vector<12x20xf32>
    %237 = arith.maximumf %229, %225 : vector<12x20xf32>
    %238 = arith.minimumf %231, %226 : vector<12x20xf32>
    %239 = arith.maximumf %231, %226 : vector<12x20xf32>
    %240 = arith.minimumf %234, %236 : vector<12x20xf32>
    %241 = arith.maximumf %234, %236 : vector<12x20xf32>
    %242 = arith.minimumf %240, %238 : vector<12x20xf32>
    %243 = arith.maximumf %240, %238 : vector<12x20xf32>
    %244 = arith.maximumf %242, %233 : vector<12x20xf32>
    %245 = arith.minimumf %235, %244 : vector<12x20xf32>
    %246 = arith.maximumf %235, %244 : vector<12x20xf32>
    %247 = arith.minimumf %237, %246 : vector<12x20xf32>
    %248 = arith.maximumf %237, %246 : vector<12x20xf32>
    %249 = arith.minimumf %239, %248 : vector<12x20xf32>
    %c0_79 = arith.constant 0 : index
    %c0_80 = arith.constant 0 : index
    %c4_81 = arith.constant 4 : index
    %c1_82 = arith.constant 1 : index
    %250 = vector.load %arg3[%c0_79, %c0_80, %c4_81, %c1_82] : memref<1x1x16x24xf32, #tpu.memory_space<vmem>>, vector<1x1x12x20xf32>
    %251 = vector.shape_cast %250 : vector<1x1x12x20xf32> to vector<12x20xf32>
    %252 = arith.minimumf %245, %241 : vector<12x20xf32>
    %253 = arith.maximumf %245, %241 : vector<12x20xf32>
    %254 = arith.minimumf %247, %243 : vector<12x20xf32>
    %255 = arith.maximumf %247, %243 : vector<12x20xf32>
    %256 = arith.minimumf %249, %251 : vector<12x20xf32>
    %257 = arith.maximumf %249, %251 : vector<12x20xf32>
    %258 = arith.minimumf %252, %254 : vector<12x20xf32>
    %259 = arith.maximumf %252, %254 : vector<12x20xf32>
    %260 = arith.maximumf %258, %256 : vector<12x20xf32>
    %261 = arith.minimumf %253, %257 : vector<12x20xf32>
    %262 = arith.maximumf %253, %257 : vector<12x20xf32>
    %263 = arith.minimumf %255, %262 : vector<12x20xf32>
    %c0_83 = arith.constant 0 : index
    %c0_84 = arith.constant 0 : index
    %c4_85 = arith.constant 4 : index
    %c2_86 = arith.constant 2 : index
    %264 = vector.load %arg3[%c0_83, %c0_84, %c4_85, %c2_86] : memref<1x1x16x24xf32, #tpu.memory_space<vmem>>, vector<1x1x12x20xf32>
    %265 = vector.shape_cast %264 : vector<1x1x12x20xf32> to vector<12x20xf32>
    %266 = arith.minimumf %261, %259 : vector<12x20xf32>
    %267 = arith.maximumf %261, %259 : vector<12x20xf32>
    %268 = arith.minimumf %263, %260 : vector<12x20xf32>
    %269 = arith.maximumf %263, %260 : vector<12x20xf32>
    %270 = arith.minimumf %266, %268 : vector<12x20xf32>
    %271 = arith.maximumf %266, %268 : vector<12x20xf32>
    %272 = arith.maximumf %270, %265 : vector<12x20xf32>
    %273 = arith.minimumf %267, %272 : vector<12x20xf32>
    %274 = arith.maximumf %267, %272 : vector<12x20xf32>
    %275 = arith.minimumf %269, %274 : vector<12x20xf32>
    %c0_87 = arith.constant 0 : index
    %c0_88 = arith.constant 0 : index
    %c4_89 = arith.constant 4 : index
    %c3_90 = arith.constant 3 : index
    %276 = vector.load %arg3[%c0_87, %c0_88, %c4_89, %c3_90] : memref<1x1x16x24xf32, #tpu.memory_space<vmem>>, vector<1x1x12x20xf32>
    %277 = vector.shape_cast %276 : vector<1x1x12x20xf32> to vector<12x20xf32>
    %278 = arith.minimumf %273, %271 : vector<12x20xf32>
    %279 = arith.maximumf %273, %271 : vector<12x20xf32>
    %280 = arith.minimumf %275, %277 : vector<12x20xf32>
    %281 = arith.maximumf %275, %277 : vector<12x20xf32>
    %282 = arith.maximumf %278, %280 : vector<12x20xf32>
    %283 = arith.minimumf %279, %281 : vector<12x20xf32>
    %c0_91 = arith.constant 0 : index
    %c0_92 = arith.constant 0 : index
    %c4_93 = arith.constant 4 : index
    %c4_94 = arith.constant 4 : index
    %284 = vector.load %arg3[%c0_91, %c0_92, %c4_93, %c4_94] : memref<1x1x16x24xf32, #tpu.memory_space<vmem>>, vector<1x1x12x20xf32>
    %285 = vector.shape_cast %284 : vector<1x1x12x20xf32> to vector<12x20xf32>
    %286 = arith.minimumf %283, %282 : vector<12x20xf32>
    %287 = arith.maximumf %283, %282 : vector<12x20xf32>
    %288 = arith.maximumf %286, %285 : vector<12x20xf32>
    %289 = arith.minimumf %287, %288 : vector<12x20xf32>
    %c8_i32 = arith.constant 8 : i32
    %290 = arith.muli %arg1, %c8_i32 : i32
    %c2_i32 = arith.constant 2 : i32
    %291 = arith.subi %290, %c2_i32 : i32
    %292 = tpu.iota {dimensions = array<i32: 0>} : vector<12x20xi32>
    %293 = vector.broadcast %291 : i32 to vector<12x20xi32>
    %294 = arith.addi %292, %293 : vector<12x20xi32>
    %295 = tpu.iota {dimensions = array<i32: 1>} : vector<12x20xi32>
    %c0_i32 = arith.constant 0 : i32
    %296 = vector.broadcast %c0_i32 : i32 to vector<12x20xi32>
    %297 = arith.cmpi sge, %294, %296 : vector<12x20xi32>
    %c16_i32 = arith.constant 16 : i32
    %298 = vector.broadcast %c16_i32 : i32 to vector<12x20xi32>
    %299 = arith.cmpi slt, %294, %298 : vector<12x20xi32>
    %300 = arith.andi %297, %299 : vector<12x20xi1>
    %c2_i32_95 = arith.constant 2 : i32
    %301 = vector.broadcast %c2_i32_95 : i32 to vector<12x20xi32>
    %302 = arith.cmpi sge, %295, %301 : vector<12x20xi32>
    %303 = arith.andi %300, %302 : vector<12x20xi1>
    %c18_i32 = arith.constant 18 : i32
    %304 = vector.broadcast %c18_i32 : i32 to vector<12x20xi32>
    %305 = arith.cmpi slt, %295, %304 : vector<12x20xi32>
    %306 = arith.andi %303, %305 : vector<12x20xi1>
    %cst = arith.constant 0.000000e+00 : f32
    %307 = vector.broadcast %cst : f32 to vector<12x20xf32>
    %308 = arith.select %306, %289, %307 : vector<12x20xi1>, vector<12x20xf32>
    %c0_96 = arith.constant 0 : index
    %309 = memref.load %arg2[%c0_96] : memref<5xf32, #tpu.memory_space<smem>>
    %310 = vector.extract_strided_slice %308 {offsets = [0, 0], sizes = [8, 20], strides = [1, 1]} : vector<12x20xf32> to vector<8x20xf32>
    %311 = vector.broadcast %309 : f32 to vector<8x20xf32>
    %312 = arith.mulf %311, %310 : vector<8x20xf32>
    %c1_97 = arith.constant 1 : index
    %313 = memref.load %arg2[%c1_97] : memref<5xf32, #tpu.memory_space<smem>>
    %314 = vector.extract_strided_slice %308 {offsets = [1, 0], sizes = [8, 20], strides = [1, 1]} : vector<12x20xf32> to vector<8x20xf32>
    %315 = vector.broadcast %313 : f32 to vector<8x20xf32>
    %316 = arith.mulf %315, %314 : vector<8x20xf32>
    %317 = arith.addf %312, %316 : vector<8x20xf32>
    %c2_98 = arith.constant 2 : index
    %318 = memref.load %arg2[%c2_98] : memref<5xf32, #tpu.memory_space<smem>>
    %319 = vector.extract_strided_slice %308 {offsets = [2, 0], sizes = [8, 20], strides = [1, 1]} : vector<12x20xf32> to vector<8x20xf32>
    %320 = vector.broadcast %318 : f32 to vector<8x20xf32>
    %321 = arith.mulf %320, %319 : vector<8x20xf32>
    %322 = arith.addf %317, %321 : vector<8x20xf32>
    %c3_99 = arith.constant 3 : index
    %323 = memref.load %arg2[%c3_99] : memref<5xf32, #tpu.memory_space<smem>>
    %324 = vector.extract_strided_slice %308 {offsets = [3, 0], sizes = [8, 20], strides = [1, 1]} : vector<12x20xf32> to vector<8x20xf32>
    %325 = vector.broadcast %323 : f32 to vector<8x20xf32>
    %326 = arith.mulf %325, %324 : vector<8x20xf32>
    %327 = arith.addf %322, %326 : vector<8x20xf32>
    %c4_100 = arith.constant 4 : index
    %328 = memref.load %arg2[%c4_100] : memref<5xf32, #tpu.memory_space<smem>>
    %329 = vector.extract_strided_slice %308 {offsets = [4, 0], sizes = [8, 20], strides = [1, 1]} : vector<12x20xf32> to vector<8x20xf32>
    %330 = vector.broadcast %328 : f32 to vector<8x20xf32>
    %331 = arith.mulf %330, %329 : vector<8x20xf32>
    %332 = arith.addf %327, %331 : vector<8x20xf32>
    %c0_101 = arith.constant 0 : index
    %333 = memref.load %arg2[%c0_101] : memref<5xf32, #tpu.memory_space<smem>>
    %334 = vector.extract_strided_slice %332 {offsets = [0, 0], sizes = [8, 16], strides = [1, 1]} : vector<8x20xf32> to vector<8x16xf32>
    %335 = vector.broadcast %333 : f32 to vector<8x16xf32>
    %336 = arith.mulf %335, %334 : vector<8x16xf32>
    %c1_102 = arith.constant 1 : index
    %337 = memref.load %arg2[%c1_102] : memref<5xf32, #tpu.memory_space<smem>>
    %338 = vector.extract_strided_slice %332 {offsets = [0, 1], sizes = [8, 16], strides = [1, 1]} : vector<8x20xf32> to vector<8x16xf32>
    %339 = vector.broadcast %337 : f32 to vector<8x16xf32>
    %340 = arith.mulf %339, %338 : vector<8x16xf32>
    %341 = arith.addf %336, %340 : vector<8x16xf32>
    %c2_103 = arith.constant 2 : index
    %342 = memref.load %arg2[%c2_103] : memref<5xf32, #tpu.memory_space<smem>>
    %343 = vector.extract_strided_slice %332 {offsets = [0, 2], sizes = [8, 16], strides = [1, 1]} : vector<8x20xf32> to vector<8x16xf32>
    %344 = vector.broadcast %342 : f32 to vector<8x16xf32>
    %345 = arith.mulf %344, %343 : vector<8x16xf32>
    %346 = arith.addf %341, %345 : vector<8x16xf32>
    %c3_104 = arith.constant 3 : index
    %347 = memref.load %arg2[%c3_104] : memref<5xf32, #tpu.memory_space<smem>>
    %348 = vector.extract_strided_slice %332 {offsets = [0, 3], sizes = [8, 16], strides = [1, 1]} : vector<8x20xf32> to vector<8x16xf32>
    %349 = vector.broadcast %347 : f32 to vector<8x16xf32>
    %350 = arith.mulf %349, %348 : vector<8x16xf32>
    %351 = arith.addf %346, %350 : vector<8x16xf32>
    %c4_105 = arith.constant 4 : index
    %352 = memref.load %arg2[%c4_105] : memref<5xf32, #tpu.memory_space<smem>>
    %353 = vector.extract_strided_slice %332 {offsets = [0, 4], sizes = [8, 16], strides = [1, 1]} : vector<8x20xf32> to vector<8x16xf32>
    %354 = vector.broadcast %352 : f32 to vector<8x16xf32>
    %355 = arith.mulf %354, %353 : vector<8x16xf32>
    %356 = arith.addf %351, %355 : vector<8x16xf32>
    %c0_106 = arith.constant 0 : index
    %c0_107 = arith.constant 0 : index
    %c0_108 = arith.constant 0 : index
    %357 = vector.load %arg4[%c0_106, %c0_107, %c0_108] : memref<1x8x16xf32, #tpu.memory_space<vmem>>, vector<1x8x16xf32>
    %358 = vector.shape_cast %357 : vector<1x8x16xf32> to vector<8x16xf32>
    %359 = vector.shape_cast %356 : vector<8x16xf32> to vector<1x8x16xf32>
    tpu.vector_store %arg4[%c0_106, %c0_107, %c0_108], %359 {strides = array<i32>} : memref<1x8x16xf32, #tpu.memory_space<vmem>>, vector<1x8x16xf32>,
    return
  }
  func.func @transform_0(%arg0: i32, %arg1: i32) -> i32 {
    %c0_i32 = arith.constant 0 : i32
    %c0_i32_0 = arith.constant 0 : i32
    return %c0_i32 : i32
  }
  func.func @transform_1(%arg0: i32, %arg1: i32) -> (i32, i32, i32, i32) {
    %c0_i32 = arith.constant 0 : i32
    %c0_i32_0 = arith.constant 0 : i32
    %c0_i32_1 = arith.constant 0 : i32
    return %arg0, %arg1, %c0_i32, %c0_i32_0 : i32, i32, i32, i32
  }
  func.func @transform_2(%arg0: i32, %arg1: i32) -> (i32, i32, i32) {
    %c0_i32 = arith.constant 0 : i32
    %c0_i32_0 = arith.constant 0 : i32
    return %arg0, %arg1, %c0_i32 : i32, i32, i32
  }
}

</mosaic_0001>

<llo_original>
// kernel: smoothing_layer.1
$region0: #{smoothing_layer.1}
  #allocation0 [shape = 'u32[]', space=smem, size = 0x4, offset = 0x4, fixed_abs, tag = 'smem constant byte address 0x4 - core index']
  #allocation1 [shape = 'u32[144,128]{1,0:T(1,128)}', space=vmem, size = 0x12000, scoped, tag = 'internal scratch']
  %s0 = inlined_call_operand.vmem [shape: f32[5], index: 0, kind: input, shape index: {}]
  %s1 = inlined_call_operand.vmem [shape: f32[2,2,16,24], index: 1, kind: input, shape index: {}]
  %s2 = inlined_call_operand.hbm [shape: f32[2,16,16], index: 2, kind: output, shape index: {}]
  %s3 = sld [smem:[#allocation0]]
  $region45: #{smoothing_layer.1} parent=0
    _
  %s5 = ssub.s32 1, %s3
  %s6 = scalar_select 0, %s5, %s3
  $region1: #{smoothing_layer.1} parent=0
    #allocation2 [shape = 'u8[512]{0}', space=smem, size = 0x200, scoped, tag = 'input window, operand 0, single buffered']
    #allocation3 [shape = 's32[2]{0}', space=sflag, size = 0x8, scoped, tag = 'scoped memory for smoothing_layer.1']
    #allocation4 [shape = 's32[2]{0}', space=sflag, size = 0x8, scoped, tag = 'scoped memory for smoothing_layer.1']
    #allocation5 [shape = 'u8[8192]{0}', space=vmem, size = 0x2000, scoped, tag = 'output window, operand 0']
    %7 = vsyncpa [#allocation4], 0
    %8 = vsyncpa [#allocation3], 0
    %s9 = scalar_lea.sflag [#allocation3], 1
    %10 = vsyncpa %s9, 0
    loop: start=0, step=1, limit=6
    $region2: #{smoothing_layer.1} parent=1 // loop_pre_header
      _
    $region3: #{smoothing_layer.1} parent=1 // loop_header
      %s12 = sphi 0, %s16
      %p13 = scmp.ge.s32.totalorder %s12, 6
      %s19 = sphi 0, %s31
      %s20 = sphi 0, %s27
      %s21 = sphi 0, %s19
      %s22 = sphi 0, %s20
      %s23 = sphi 0, %s21
      %s24 = sphi 0, %s22
      %s32 = sphi 0, %s32
      %s34 = sphi 0, %s32
      %s35 = sphi 0, %s34
      %s49 = sphi 0, %s35
      %s57 = sphi 0, %s59
      %s60 = sphi 0, %s57
      %s61 = sphi 0, %s60
      %s77 = sphi 0, %s61
      %s85 = sphi 0, %s87
      %s88 = sphi 0, %s85
      %s89 = sphi 0, %s88
      %s105 = sphi 0, %s89
    $region4: #{smoothing_layer.1} parent=1 // loop_header_branch
      %15 = sbr.rel (%p13) target = $region8
    $region5: #{smoothing_layer.1} parent=1 // loop_body
      %s17 = ssub.s32 %s12, 1
      %s18 = ssub.s32 %s12, 2
      %s25 = sadd.s32 1, %s20
      %p26 = scmp.ge.s32.totalorder %s25, 2
      %s27 = scalar_select %p26, 0, %s25
      %s28 = sadd.s32 1, %s19
      %s29 = scalar_select %p26, %s28, %s19
      %p30 = scmp.ge.s32.totalorder %s29, 2
      %s31 = scalar_select %p30, 0, %s29
      %s33 = sadd.s32 %s32, 1
      %p36 = scmp.eq.s32.totalorder %s12, 3
      %p37 = scmp.ne.s32.totalorder %s32, %s34
      %p38 = scmp.eq.s32.totalorder %s12, 0
      %p39 = por %p37, %p38
      %p40 = scmp.ne.s32.totalorder %s32, %s34
      %p41 = scmp.eq.s32.totalorder %s17, 3
      %p42 = por %p40, %p41
      %p43 = scmp.ne.s32.totalorder %s34, %s35
      %p44 = scmp.eq.s32.totalorder %s17, 0
      %p45 = por %p43, %p44
      %p46 = scmp.ne.s32.totalorder %s34, %s35
      %p47 = scmp.eq.s32.totalorder %s18, 3
      %p48 = por %p46, %p47
      %p50 = scmp.ne.s32.totalorder %s35, %s49
      %p51 = scmp.eq.s32.totalorder %s18, 0
      %p52 = por %p50, %p51
      %s53 = ssub.s32 %s19, %s31
      %s54 = ssub.s32 %s20, %s27
      %s55 = sor.u32 %s53, %s54
      %p56 = scmp.eq.s32.totalorder %s55, 0
      %s58 = sadd.s32 %s57, 1
      %s59 = scalar_select %p56, %s57, %s58
      %p62 = pneg %p56
      %p63 = scmp.eq.s32.totalorder %s12, 3
      %p64 = por %p62, %p63
      %p65 = scmp.ne.s32.totalorder %s57, %s60
      %p66 = scmp.eq.s32.totalorder %s12, 0
      %p67 = por %p65, %p66
      %p68 = scmp.ne.s32.totalorder %s57, %s60
      %p69 = scmp.eq.s32.totalorder %s17, 3
      %p70 = por %p68, %p69
      %p71 = scmp.ne.s32.totalorder %s60, %s61
      %p72 = scmp.eq.s32.totalorder %s17, 0
      %p73 = por %p71, %p72
      %p74 = scmp.ne.s32.totalorder %s60, %s61
      %p75 = scmp.eq.s32.totalorder %s18, 3
      %p76 = por %p74, %p75
      %p78 = scmp.ne.s32.totalorder %s61, %s77
      %p79 = scmp.eq.s32.totalorder %s18, 0
      %p80 = por %p78, %p79
      %s81 = ssub.s32 %s19, %s31
      %s82 = ssub.s32 %s20, %s27
      %s83 = sor.u32 %s81, %s82
      %p84 = scmp.eq.s32.totalorder %s83, 0
      %s86 = sadd.s32 %s85, 1
      %s87 = scalar_select %p84, %s85, %s86
      %p90 = pneg %p84
      %p91 = scmp.eq.s32.totalorder %s12, 3
      %p92 = por %p90, %p91
      %p93 = scmp.ne.s32.totalorder %s85, %s88
      %p94 = scmp.eq.s32.totalorder %s12, 0
      %p95 = por %p93, %p94
      %p96 = scmp.ne.s32.totalorder %s85, %s88
      %p97 = scmp.eq.s32.totalorder %s17, 3
      %p98 = por %p96, %p97
      %p99 = scmp.ne.s32.totalorder %s88, %s89
      %p100 = scmp.eq.s32.totalorder %s17, 0
      %p101 = por %p99, %p100
      %p102 = scmp.ne.s32.totalorder %s88, %s89
      %p103 = scmp.eq.s32.totalorder %s18, 3
      %p104 = por %p102, %p103
      %p106 = scmp.ne.s32.totalorder %s89, %s105
      %p107 = scmp.eq.s32.totalorder %s18, 0
      %p108 = por %p106, %p107
      %p109 = scmp.le.s32.totalorder 1, %s12
      %p110 = scmp.lt.s32.totalorder %s12, 5
      %p111 = pnand %p109, %p110
      %p112 = pneg %p111
      // Predicated region
      $region9: #{smoothing_layer.1} parent=5 // pred_check
        _
      $region10: #{smoothing_layer.1} parent=5 // pred_check_branch
        %114 = sbr.rel (%p111) target = $region12
      $region11: #{smoothing_layer.1} parent=5 // pred_region
        %s115 = ssub.s32 %s12, 1
        // Predicated region
        $region13: #{smoothing_layer.1} parent=11 // pred_check
          %p116 = pneg %p45
        $region14: #{smoothing_layer.1} parent=11 // pred_check_branch
          %118 = sbr.rel (%p116) target = $region16
        $region15: #{smoothing_layer.1} parent=11 // pred_region
          %s120 = ssub.s32 16, 16
          %121 = vsyncadd [#allocation4], %s120
          %s123 = sshll.u32 %s0, 4
          %s124 = int_to_ptr.vmem [resolvable:$true] %s123
          %126 = dma.vmem_to_smem %s124, 16, [#allocation2], [#allocation4]
        $region16: #{smoothing_layer.1} parent=11 // pred_fallthru
          _
      $region12: #{smoothing_layer.1} parent=5 // pred_fallthru
        _
      %p127 = scmp.lt.s32.totalorder %s12, 4
      // Predicated region
      $region17: #{smoothing_layer.1} parent=5 // pred_check
        %p128 = pneg %p127
      $region18: #{smoothing_layer.1} parent=5 // pred_check_branch
        %130 = sbr.rel (%p128) target = $region20
      $region19: #{smoothing_layer.1} parent=5 // pred_region
        // Predicated region
        $region21: #{smoothing_layer.1} parent=19 // pred_check
          %p131 = pneg %p67
        $region22: #{smoothing_layer.1} parent=19 // pred_check_branch
          %133 = sbr.rel (%p131) target = $region24
        $region23: #{smoothing_layer.1} parent=19 // pred_region
          %p134 = scmp.lt.s32.totalorder %s19, 1
          %s135 = scalar_select %p134, %s19, 1
          %p136 = scmp.lt.s32.totalorder %s20, 1
          %s137 = scalar_select %p136, %s20, 1
          %s138 = smul.addr %s137, 2
          %s139 = smul.addr %s135, 4
          %s140 = sadd.s32 %s138, %s139
          %s141 = smul.addr %s140, 8
          %s142 = scalar_lea.vmem %s1, %s141
        $region24: #{smoothing_layer.1} parent=19 // pred_fallthru
          _
      $region20: #{smoothing_layer.1} parent=5 // pred_fallthru
        _
      %p143 = scmp.le.s32.totalorder 1, %s12
      %p144 = scmp.lt.s32.totalorder %s12, 5
      %p145 = pnand %p143, %p144
      %p146 = pneg %p145
      // Predicated region
      $region25: #{smoothing_layer.1} parent=5 // pred_check
        _
      $region26: #{smoothing_layer.1} parent=5 // pred_check_branch
        %148 = sbr.rel (%p145) target = $region28
      $region27: #{smoothing_layer.1} parent=5 // pred_region
        %s149 = ssub.s32 %s12, 1
        // Predicated region
        $region29: #{smoothing_layer.1} parent=27 // pred_check
          %p150 = pneg %p45
        $region30: #{smoothing_layer.1} parent=27 // pred_check_branch
          %152 = sbr.rel (%p150) target = $region32
        $region31: #{smoothing_layer.1} parent=27 // pred_region
          %153 = dma.done [#allocation4], 16
        $region32: #{smoothing_layer.1} parent=27 // pred_fallthru
          _
        %154 = sfence
        %p155 = pneg %p45
        %p156 = pneg %p42
        %p157 = scmp.lt.s32.totalorder %s21, 1
        %s158 = scalar_select %p157, %s21, 1
        %p159 = scmp.lt.s32.totalorder %s22, 1
        %s160 = scalar_select %p159, %s22, 1
        %s161 = smul.addr %s160, 2
        %s162 = smul.addr %s158, 4
        %s163 = sadd.s32 %s161, %s162
        %s164 = smul.addr %s163, 8
        %s165 = scalar_lea.vmem %s1, %s164
        %p166 = pneg %p73
        %p167 = pneg %p70
        %p168 = pneg %p101
        %p169 = pneg %p98
        %s170 = sand.u32 %s88, 1
        %s171 = scalar_lea.sflag [#allocation3], %s170
        %s172 = sand.u32 %s88, 1
        %s173 = smul.addr %s172, 8
        %s174 = scalar_lea.vmem [#allocation5], %s173
        %p175 = scmp.lt.s32.totalorder %s21, 1
        %s176 = scalar_select %p175, %s21, 1
        %p177 = scmp.lt.s32.totalorder %s22, 1
        %s178 = scalar_select %p177, %s22, 1
        %s179 = smul.addr %s178, 2
        %s180 = smul.addr %s176, 4
        %s181 = sadd.s32 %s179, %s180
        %s182 = smul.addr %s181, 8
        %s183 = scalar_lea.vmem %s1, %s182
        %v184 = vld [vmem:[%s183] sm:$0xff]
        %v185 = vld [vmem:[%s183 + $0x8] sm:$0xf]
        %v186 = vld [vmem:[%s183 + $0x1] sm:$0xff]
        %v187 = vld [vmem:[%s183 + $0x9] sm:$0xf]
        %v188 = vld [vmem:[%s183 + $0x2] sm:$0xff]
        %v189 = vld [vmem:[%s183 + $0xa] sm:$0xf]
        %192 = vrot.lane.b32.xlu0 %v184, 127
        %v193 = vpop.permute.xlu0 %192
        %194 = vrot.lane.b32.xlu0 %v185, 127
        %v195 = vpop.permute.xlu0 %194
        %v198 = vmin.f32 %v184, %v193
        %v199 = vmin.f32 %v185, %v195
        %v200 = vmax.f32 %v184, %v193
        %v201 = vmax.f32 %v185, %v195
        %204 = vrot.lane.b32.xlu0 %v186, 4
        %v205 = vpop.permute.xlu0 %204
        %206 = vrot.lane.b32.xlu0 %v187, 4
        %v207 = vpop.permute.xlu0 %206
        %v210 = vmin.f32 %v184, %v205
        %v211 = vmin.f32 %v185, %v207
        %v212 = vmax.f32 %v184, %v205
        %v213 = vmax.f32 %v185, %v207
        %214 = vrot.lane.b32.xlu0 %v186, 127
        %v215 = vpop.permute.xlu0 %214
        %216 = vrot.lane.b32.xlu0 %v187, 127
        %v217 = vpop.permute.xlu0 %216
        %v220 = vmin.f32 %v186, %v215
        %v221 = vmin.f32 %v187, %v217
        %v222 = vmax.f32 %v186, %v215
        %v223 = vmax.f32 %v187, %v217
        %226 = vrot.lane.b32.xlu0 %v188, 127
        %v227 = vpop.permute.xlu0 %226
        %228 = vrot.lane.b32.xlu0 %v189, 127
        %v229 = vpop.permute.xlu0 %228
        %v232 = vmin.f32 %v188, %v227
        %v233 = vmin.f32 %v189, %v229
        %v234 = vmax.f32 %v188, %v227
        %v235 = vmax.f32 %v189, %v229
        %238 = vrot.lane.b32.xlu0 %v198, 126
        %v239 = vpop.permute.xlu0 %238
        %240 = vrot.lane.b32.xlu0 %v199, 126
        %v241 = vpop.permute.xlu0 %240
        %v244 = vmin.f32 %v198, %v239
        %v245 = vmin.f32 %v199, %v241
        %v246 = vmax.f32 %v198, %v239
        %v247 = vmax.f32 %v199, %v241
        %250 = vrot.lane.b32.xlu0 %v210, 124
        %v251 = vpop.permute.xlu0 %250
        %252 = vrot.lane.b32.xlu0 %v211, 124
        %v253 = vpop.permute.xlu0 %252
        %v256 = vmin.f32 %v244, %v251
        %v257 = vmin.f32 %v245, %v253
        %v258 = vmax.f32 %v244, %v251
        %v259 = vmax.f32 %v245, %v253
        %262 = vrot.lane.b32.xlu0 %v220, 127
        %v263 = vpop.permute.xlu0 %262
        %264 = vrot.lane.b32.xlu0 %v221, 127
        %v265 = vpop.permute.xlu0 %264
        %v268 = vmin.f32 %v256, %v263
        %v269 = vmin.f32 %v257, %v265
        %v270 = vmax.f32 %v256, %v263
        %v271 = vmax.f32 %v257, %v265
        %272 = vrot.lane.b32.xlu0 %v220, 125
        %v273 = vpop.permute.xlu0 %272
        %274 = vrot.lane.b32.xlu0 %v221, 125
        %v275 = vpop.permute.xlu0 %274
        %v278 = vmin.f32 %v268, %v273
        %v279 = vmin.f32 %v269, %v275
        %v280 = vmax.f32 %v268, %v273
        %v281 = vmax.f32 %v269, %v275
        %v282 = vmin.f32 %v278, %v232
        %v283 = vmin.f32 %v279, %v233
        %v284 = vmax.f32 %v278, %v232
        %v285 = vmax.f32 %v279, %v233
        %288 = vrot.lane.b32.xlu0 %v232, 126
        %v289 = vpop.permute.xlu0 %288
        %290 = vrot.lane.b32.xlu0 %v233, 126
        %v291 = vpop.permute.xlu0 %290
        %v294 = vmax.f32 %v282, %v289
        %v295 = vmax.f32 %v283, %v291
        %298 = vrot.lane.b32.xlu0 %v234, 126
        %v299 = vpop.permute.xlu0 %298
        %300 = vrot.lane.b32.xlu0 %v235, 126
        %v301 = vpop.permute.xlu0 %300
        %v304 = vmin.f32 %v200, %v299
        %v305 = vmin.f32 %v201, %v301
        %v306 = vmax.f32 %v200, %v299
        %v307 = vmax.f32 %v201, %v301
        %310 = vrot.lane.b32.xlu0 %v306, 2
        %v311 = vpop.permute.xlu0 %310
        %312 = vrot.lane.b32.xlu0 %v307, 2
        %v313 = vpop.permute.xlu0 %312
        %v316 = vmin.f32 %v200, %v311
        %v317 = vmin.f32 %v201, %v313
        %v318 = vmax.f32 %v200, %v311
        %v319 = vmax.f32 %v201, %v313
        %322 = vrot.lane.b32.xlu0 %v318, 2
        %v323 = vpop.permute.xlu0 %322
        %324 = vrot.lane.b32.xlu0 %v319, 2
        %v325 = vpop.permute.xlu0 %324
        %v328 = vmin.f32 %v212, %v323
        %v329 = vmin.f32 %v213, %v325
        %v330 = vmax.f32 %v212, %v323
        %v331 = vmax.f32 %v213, %v325
        %334 = vrot.lane.b32.xlu0 %v330, 125
        %v335 = vpop.permute.xlu0 %334
        %336 = vrot.lane.b32.xlu0 %v331, 125
        %v337 = vpop.permute.xlu0 %336
        %v340 = vmin.f32 %v222, %v335
        %v341 = vmin.f32 %v223, %v337
        %v342 = vmax.f32 %v222, %v335
        %v343 = vmax.f32 %v223, %v337
        %346 = vrot.lane.b32.xlu0 %v342, 2
        %v347 = vpop.permute.xlu0 %346
        %348 = vrot.lane.b32.xlu0 %v343, 2
        %v349 = vpop.permute.xlu0 %348
        %v352 = vmin.f32 %v222, %v347
        %v353 = vmin.f32 %v223, %v349
        %v354 = vmax.f32 %v222, %v347
        %v355 = vmax.f32 %v223, %v349
        %358 = vrot.lane.b32.xlu0 %v354, 125
        %v359 = vpop.permute.xlu0 %358
        %360 = vrot.lane.b32.xlu0 %v355, 125
        %v361 = vpop.permute.xlu0 %360
        %v364 = vmin.f32 %v234, %v359
        %v365 = vmin.f32 %v235, %v361
        %v366 = vmin.f32 %v304, %v246
        %v367 = vmin.f32 %v305, %v247
        %v368 = vmax.f32 %v304, %v246
        %v369 = vmax.f32 %v305, %v247
        %372 = vrot.lane.b32.xlu0 %v258, 2
        %v373 = vpop.permute.xlu0 %372
        %374 = vrot.lane.b32.xlu0 %v259, 2
        %v375 = vpop.permute.xlu0 %374
        %v378 = vmin.f32 %v316, %v373
        %v379 = vmin.f32 %v317, %v375
        %v380 = vmax.f32 %v316, %v373
        %v381 = vmax.f32 %v317, %v375
        %384 = vrot.lane.b32.xlu0 %v270, 4
        %v385 = vpop.permute.xlu0 %384
        %386 = vrot.lane.b32.xlu0 %v271, 4
        %v387 = vpop.permute.xlu0 %386
        %v390 = vmin.f32 %v328, %v385
        %v391 = vmin.f32 %v329, %v387
        %v392 = vmax.f32 %v328, %v385
        %v393 = vmax.f32 %v329, %v387
        %396 = vrot.lane.b32.xlu0 %v280, 1
        %v397 = vpop.permute.xlu0 %396
        %398 = vrot.lane.b32.xlu0 %v281, 1
        %v399 = vpop.permute.xlu0 %398
        %v402 = vmin.f32 %v340, %v397
        %v403 = vmin.f32 %v341, %v399
        %v404 = vmax.f32 %v340, %v397
        %v405 = vmax.f32 %v341, %v399
        %408 = vrot.lane.b32.xlu0 %v284, 3
        %v409 = vpop.permute.xlu0 %408
        %410 = vrot.lane.b32.xlu0 %v285, 3
        %v411 = vpop.permute.xlu0 %410
        %v414 = vmin.f32 %v352, %v409
        %v415 = vmin.f32 %v353, %v411
        %v416 = vmax.f32 %v352, %v409
        %v417 = vmax.f32 %v353, %v411
        %v418 = vmin.f32 %v364, %v294
        %v419 = vmin.f32 %v365, %v295
        %v420 = vmax.f32 %v364, %v294
        %v421 = vmax.f32 %v365, %v295
        %424 = vrot.lane.b32.xlu0 %v378, 126
        %v425 = vpop.permute.xlu0 %424
        %426 = vrot.lane.b32.xlu0 %v379, 126
        %v427 = vpop.permute.xlu0 %426
        %v430 = vmin.f32 %v366, %v425
        %v431 = vmin.f32 %v367, %v427
        %v432 = vmax.f32 %v366, %v425
        %v433 = vmax.f32 %v367, %v427
        %436 = vrot.lane.b32.xlu0 %v390, 124
        %v437 = vpop.permute.xlu0 %436
        %438 = vrot.lane.b32.xlu0 %v391, 124
        %v439 = vpop.permute.xlu0 %438
        %v442 = vmin.f32 %v430, %v437
        %v443 = vmin.f32 %v431, %v439
        %v444 = vmax.f32 %v430, %v437
        %v445 = vmax.f32 %v431, %v439
        %448 = vrot.lane.b32.xlu0 %v402, 127
        %v449 = vpop.permute.xlu0 %448
        %450 = vrot.lane.b32.xlu0 %v403, 127
        %v451 = vpop.permute.xlu0 %450
        %v454 = vmin.f32 %v442, %v449
        %v455 = vmin.f32 %v443, %v451
        %v456 = vmax.f32 %v442, %v449
        %v457 = vmax.f32 %v443, %v451
        %460 = vrot.lane.b32.xlu0 %v414, 125
        %v461 = vpop.permute.xlu0 %460
        %462 = vrot.lane.b32.xlu0 %v415, 125
        %v463 = vpop.permute.xlu0 %462
        %v466 = vmin.f32 %v454, %v461
        %v467 = vmin.f32 %v455, %v463
        %v468 = vmax.f32 %v454, %v461
        %v469 = vmax.f32 %v455, %v463
        %v470 = vmin.f32 %v466, %v418
        %v471 = vmin.f32 %v467, %v419
        %v472 = vmax.f32 %v466, %v418
        %v473 = vmax.f32 %v467, %v419
        %474 = vrot.lane.b32.xlu0 %v188, 124
        %v475 = vpop.permute.xlu0 %474
        %476 = vrot.lane.b32.xlu0 %v189, 124
        %v477 = vpop.permute.xlu0 %476
        %v480 = vmax.f32 %v470, %v475
        %v481 = vmax.f32 %v471, %v477
        %v482 = vmin.f32 %v368, %v480
        %v483 = vmin.f32 %v369, %v481
        %v484 = vmax.f32 %v368, %v480
        %v485 = vmax.f32 %v369, %v481
        %488 = vrot.lane.b32.xlu0 %v484, 2
        %v489 = vpop.permute.xlu0 %488
        %490 = vrot.lane.b32.xlu0 %v485, 2
        %v491 = vpop.permute.xlu0 %490
        %v494 = vmin.f32 %v380, %v489
        %v495 = vmin.f32 %v381, %v491
        %v496 = vmax.f32 %v380, %v489
        %v497 = vmax.f32 %v381, %v491
        %500 = vrot.lane.b32.xlu0 %v496, 2
        %v501 = vpop.permute.xlu0 %500
        %502 = vrot.lane.b32.xlu0 %v497, 2
        %v503 = vpop.permute.xlu0 %502
        %v506 = vmin.f32 %v392, %v501
        %v507 = vmin.f32 %v393, %v503
        %v508 = vmax.f32 %v392, %v501
        %v509 = vmax.f32 %v393, %v503
        %512 = vrot.lane.b32.xlu0 %v508, 125
        %v513 = vpop.permute.xlu0 %512
        %514 = vrot.lane.b32.xlu0 %v509, 125
        %v515 = vpop.permute.xlu0 %514
        %v518 = vmin.f32 %v404, %v513
        %v519 = vmin.f32 %v405, %v515
        %v520 = vmax.f32 %v404, %v513
        %v521 = vmax.f32 %v405, %v515
        %524 = vrot.lane.b32.xlu0 %v520, 2
        %v525 = vpop.permute.xlu0 %524
        %526 = vrot.lane.b32.xlu0 %v521, 2
        %v527 = vpop.permute.xlu0 %526
        %v530 = vmin.f32 %v416, %v525
        %v531 = vmin.f32 %v417, %v527
        %v532 = vmax.f32 %v416, %v525
        %v533 = vmax.f32 %v417, %v527
        %536 = vrot.lane.b32.xlu0 %v532, 125
        %v537 = vpop.permute.xlu0 %536
        %538 = vrot.lane.b32.xlu0 %v533, 125
        %v539 = vpop.permute.xlu0 %538
        %v542 = vmin.f32 %v420, %v537
        %v543 = vmin.f32 %v421, %v539
        %v544 = vld [vmem:[%s183 + $0x3] sm:$0xff]
        %v545 = vld [vmem:[%s183 + $0xb] sm:$0xf]
        %v546 = vmin.f32 %v482, %v432
        %v547 = vmin.f32 %v483, %v433
        %v548 = vmax.f32 %v482, %v432
        %v549 = vmax.f32 %v483, %v433
        %552 = vrot.lane.b32.xlu0 %v444, 2
        %v553 = vpop.permute.xlu0 %552
        %554 = vrot.lane.b32.xlu0 %v445, 2
        %v555 = vpop.permute.xlu0 %554
        %v558 = vmin.f32 %v494, %v553
        %v559 = vmin.f32 %v495, %v555
        %v560 = vmax.f32 %v494, %v553
        %v561 = vmax.f32 %v495, %v555
        %564 = vrot.lane.b32.xlu0 %v456, 4
        %v565 = vpop.permute.xlu0 %564
        %566 = vrot.lane.b32.xlu0 %v457, 4
        %v567 = vpop.permute.xlu0 %566
        %v570 = vmin.f32 %v506, %v565
        %v571 = vmin.f32 %v507, %v567
        %v572 = vmax.f32 %v506, %v565
        %v573 = vmax.f32 %v507, %v567
        %576 = vrot.lane.b32.xlu0 %v468, 1
        %v577 = vpop.permute.xlu0 %576
        %578 = vrot.lane.b32.xlu0 %v469, 1
        %v579 = vpop.permute.xlu0 %578
        %v582 = vmin.f32 %v518, %v577
        %v583 = vmin.f32 %v519, %v579
        %v584 = vmax.f32 %v518, %v577
        %v585 = vmax.f32 %v519, %v579
        %588 = vrot.lane.b32.xlu0 %v472, 3
        %v589 = vpop.permute.xlu0 %588
        %590 = vrot.lane.b32.xlu0 %v473, 3
        %v591 = vpop.permute.xlu0 %590
        %v594 = vmin.f32 %v530, %v589
        %v595 = vmin.f32 %v531, %v591
        %v596 = vmax.f32 %v530, %v589
        %v597 = vmax.f32 %v531, %v591
        %v598 = vmin.f32 %v542, %v544
        %v599 = vmin.f32 %v543, %v545
        %v600 = vmax.f32 %v542, %v544
        %v601 = vmax.f32 %v543, %v545
        %604 = vrot.lane.b32.xlu0 %v558, 126
        %v605 = vpop.permute.xlu0 %604
        %606 = vrot.lane.b32.xlu0 %v559, 126
        %v607 = vpop.permute.xlu0 %606
        %v610 = vmin.f32 %v546, %v605
        %v611 = vmin.f32 %v547, %v607
        %v612 = vmax.f32 %v546, %v605
        %v613 = vmax.f32 %v547, %v607
        %616 = vrot.lane.b32.xlu0 %v570, 124
        %v617 = vpop.permute.xlu0 %616
        %618 = vrot.lane.b32.xlu0 %v571, 124
        %v619 = vpop.permute.xlu0 %618
        %v622 = vmin.f32 %v610, %v617
        %v623 = vmin.f32 %v611, %v619
        %v624 = vmax.f32 %v610, %v617
        %v625 = vmax.f32 %v611, %v619
        %628 = vrot.lane.b32.xlu0 %v582, 127
        %v629 = vpop.permute.xlu0 %628
        %630 = vrot.lane.b32.xlu0 %v583, 127
        %v631 = vpop.permute.xlu0 %630
        %v634 = vmin.f32 %v622, %v629
        %v635 = vmin.f32 %v623, %v631
        %v636 = vmax.f32 %v622, %v629
        %v637 = vmax.f32 %v623, %v631
        %640 = vrot.lane.b32.xlu0 %v594, 125
        %v641 = vpop.permute.xlu0 %640
        %642 = vrot.lane.b32.xlu0 %v595, 125
        %v643 = vpop.permute.xlu0 %642
        %v646 = vmin.f32 %v634, %v641
        %v647 = vmin.f32 %v635, %v643
        %v648 = vmax.f32 %v634, %v641
        %v649 = vmax.f32 %v635, %v643
        %v650 = vmax.f32 %v646, %v598
        %v651 = vmax.f32 %v647, %v599
        %v652 = vmin.f32 %v548, %v600
        %v653 = vmin.f32 %v549, %v601
        %v654 = vmax.f32 %v548, %v600
        %v655 = vmax.f32 %v549, %v601
        %658 = vrot.lane.b32.xlu0 %v654, 2
        %v659 = vpop.permute.xlu0 %658
        %660 = vrot.lane.b32.xlu0 %v655, 2
        %v661 = vpop.permute.xlu0 %660
        %v664 = vmin.f32 %v560, %v659
        %v665 = vmin.f32 %v561, %v661
        %v666 = vmax.f32 %v560, %v659
        %v667 = vmax.f32 %v561, %v661
        %670 = vrot.lane.b32.xlu0 %v666, 2
        %v671 = vpop.permute.xlu0 %670
        %672 = vrot.lane.b32.xlu0 %v667, 2
        %v673 = vpop.permute.xlu0 %672
        %v676 = vmin.f32 %v572, %v671
        %v677 = vmin.f32 %v573, %v673
        %v678 = vmax.f32 %v572, %v671
        %v679 = vmax.f32 %v573, %v673
        %682 = vrot.lane.b32.xlu0 %v678, 125
        %v683 = vpop.permute.xlu0 %682
        %684 = vrot.lane.b32.xlu0 %v679, 125
        %v685 = vpop.permute.xlu0 %684
        %v688 = vmin.f32 %v584, %v683
        %v689 = vmin.f32 %v585, %v685
        %v690 = vmax.f32 %v584, %v683
        %v691 = vmax.f32 %v585, %v685
        %694 = vrot.lane.b32.xlu0 %v690, 2
        %v695 = vpop.permute.xlu0 %694
        %696 = vrot.lane.b32.xlu0 %v691, 2
        %v697 = vpop.permute.xlu0 %696
        %v700 = vmin.f32 %v596, %v695
        %v701 = vmin.f32 %v597, %v697
        %v702 = vmin.f32 %v652, %v612
        %v703 = vmin.f32 %v653, %v613
        %v704 = vmax.f32 %v652, %v612
        %v705 = vmax.f32 %v653, %v613
        %708 = vrot.lane.b32.xlu0 %v624, 2
        %v709 = vpop.permute.xlu0 %708
        %710 = vrot.lane.b32.xlu0 %v625, 2
        %v711 = vpop.permute.xlu0 %710
        %v714 = vmin.f32 %v664, %v709
        %v715 = vmin.f32 %v665, %v711
        %v716 = vmax.f32 %v664, %v709
        %v717 = vmax.f32 %v665, %v711
        %720 = vrot.lane.b32.xlu0 %v636, 4
        %v721 = vpop.permute.xlu0 %720
        %722 = vrot.lane.b32.xlu0 %v637, 4
        %v723 = vpop.permute.xlu0 %722
        %v726 = vmin.f32 %v676, %v721
        %v727 = vmin.f32 %v677, %v723
        %v728 = vmax.f32 %v676, %v721
        %v729 = vmax.f32 %v677, %v723
        %732 = vrot.lane.b32.xlu0 %v648, 1
        %v733 = vpop.permute.xlu0 %732
        %734 = vrot.lane.b32.xlu0 %v649, 1
        %v735 = vpop.permute.xlu0 %734
        %v738 = vmin.f32 %v688, %v733
        %v739 = vmin.f32 %v689, %v735
        %v740 = vmax.f32 %v688, %v733
        %v741 = vmax.f32 %v689, %v735
        %744 = vrot.lane.b32.xlu0 %v650, 3
        %v745 = vpop.permute.xlu0 %744
        %746 = vrot.lane.b32.xlu0 %v651, 3
        %v747 = vpop.permute.xlu0 %746
        %v750 = vmin.f32 %v700, %v745
        %v751 = vmin.f32 %v701, %v747
        %v752 = vmax.f32 %v700, %v745
        %v753 = vmax.f32 %v701, %v747
        %756 = vrot.lane.b32.xlu0 %v714, 126
        %v757 = vpop.permute.xlu0 %756
        %758 = vrot.lane.b32.xlu0 %v715, 126
        %v759 = vpop.permute.xlu0 %758
        %v762 = vmin.f32 %v702, %v757
        %v763 = vmin.f32 %v703, %v759
        %v764 = vmax.f32 %v702, %v757
        %v765 = vmax.f32 %v703, %v759
        %768 = vrot.lane.b32.xlu0 %v726, 124
        %v769 = vpop.permute.xlu0 %768
        %770 = vrot.lane.b32.xlu0 %v727, 124
        %v771 = vpop.permute.xlu0 %770
        %v774 = vmin.f32 %v762, %v769
        %v775 = vmin.f32 %v763, %v771
        %v776 = vmax.f32 %v762, %v769
        %v777 = vmax.f32 %v763, %v771
        %780 = vrot.lane.b32.xlu0 %v738, 127
        %v781 = vpop.permute.xlu0 %780
        %782 = vrot.lane.b32.xlu0 %v739, 127
        %v783 = vpop.permute.xlu0 %782
        %v786 = vmin.f32 %v774, %v781
        %v787 = vmin.f32 %v775, %v783
        %v788 = vmax.f32 %v774, %v781
        %v789 = vmax.f32 %v775, %v783
        %792 = vrot.lane.b32.xlu0 %v750, 125
        %v793 = vpop.permute.xlu0 %792
        %794 = vrot.lane.b32.xlu0 %v751, 125
        %v795 = vpop.permute.xlu0 %794
        %v798 = vmin.f32 %v786, %v793
        %v799 = vmin.f32 %v787, %v795
        %v800 = vmax.f32 %v786, %v793
        %v801 = vmax.f32 %v787, %v795
        %804 = vrot.lane.b32.xlu0 %v544, 127
        %v805 = vpop.permute.xlu0 %804
        %806 = vrot.lane.b32.xlu0 %v545, 127
        %v807 = vpop.permute.xlu0 %806
        %v810 = vmax.f32 %v798, %v805
        %v811 = vmax.f32 %v799, %v807
        %v812 = vmin.f32 %v704, %v810
        %v813 = vmin.f32 %v705, %v811
        %v814 = vmax.f32 %v704, %v810
        %v815 = vmax.f32 %v705, %v811
        %818 = vrot.lane.b32.xlu0 %v814, 2
        %v819 = vpop.permute.xlu0 %818
        %820 = vrot.lane.b32.xlu0 %v815, 2
        %v821 = vpop.permute.xlu0 %820
        %v824 = vmin.f32 %v716, %v819
        %v825 = vmin.f32 %v717, %v821
        %v826 = vmax.f32 %v716, %v819
        %v827 = vmax.f32 %v717, %v821
        %830 = vrot.lane.b32.xlu0 %v826, 2
        %v831 = vpop.permute.xlu0 %830
        %832 = vrot.lane.b32.xlu0 %v827, 2
        %v833 = vpop.permute.xlu0 %832
        %v836 = vmin.f32 %v728, %v831
        %v837 = vmin.f32 %v729, %v833
        %v838 = vmax.f32 %v728, %v831
        %v839 = vmax.f32 %v729, %v833
        %842 = vrot.lane.b32.xlu0 %v838, 125
        %v843 = vpop.permute.xlu0 %842
        %844 = vrot.lane.b32.xlu0 %v839, 125
        %v845 = vpop.permute.xlu0 %844
        %v848 = vmin.f32 %v740, %v843
        %v849 = vmin.f32 %v741, %v845
        %v850 = vmax.f32 %v740, %v843
        %v851 = vmax.f32 %v741, %v845
        %854 = vrot.lane.b32.xlu0 %v850, 2
        %v855 = vpop.permute.xlu0 %854
        %856 = vrot.lane.b32.xlu0 %v851, 2
        %v857 = vpop.permute.xlu0 %856
        %v860 = vmin.f32 %v752, %v855
        %v861 = vmin.f32 %v753, %v857
        %v862 = vmin.f32 %v812, %v764
        %v863 = vmin.f32 %v813, %v765
        %v864 = vmax.f32 %v812, %v764
        %v865 = vmax.f32 %v813, %v765
        %868 = vrot.lane.b32.xlu0 %v776, 2
        %v869 = vpop.permute.xlu0 %868
        %870 = vrot.lane.b32.xlu0 %v777, 2
        %v871 = vpop.permute.xlu0 %870
        %v874 = vmin.f32 %v824, %v869
        %v875 = vmin.f32 %v825, %v871
        %v876 = vmax.f32 %v824, %v869
        %v877 = vmax.f32 %v825, %v871
        %880 = vrot.lane.b32.xlu0 %v788, 4
        %v881 = vpop.permute.xlu0 %880
        %882 = vrot.lane.b32.xlu0 %v789, 4
        %v883 = vpop.permute.xlu0 %882
        %v886 = vmin.f32 %v836, %v881
        %v887 = vmin.f32 %v837, %v883
        %v888 = vmax.f32 %v836, %v881
        %v889 = vmax.f32 %v837, %v883
        %892 = vrot.lane.b32.xlu0 %v800, 1
        %v893 = vpop.permute.xlu0 %892
        %894 = vrot.lane.b32.xlu0 %v801, 1
        %v895 = vpop.permute.xlu0 %894
        %v898 = vmin.f32 %v848, %v893
        %v899 = vmin.f32 %v849, %v895
        %v900 = vmax.f32 %v848, %v893
        %v901 = vmax.f32 %v849, %v895
        %902 = vrot.lane.b32.xlu0 %v544, 1
        %v903 = vpop.permute.xlu0 %902
        %904 = vrot.lane.b32.xlu0 %v545, 1
        %v905 = vpop.permute.xlu0 %904
        %v908 = vmin.f32 %v860, %v903
        %v909 = vmin.f32 %v861, %v905
        %v910 = vmax.f32 %v860, %v903
        %v911 = vmax.f32 %v861, %v905
        %914 = vrot.lane.b32.xlu0 %v874, 126
        %v915 = vpop.permute.xlu0 %914
        %916 = vrot.lane.b32.xlu0 %v875, 126
        %v917 = vpop.permute.xlu0 %916
        %v920 = vmin.f32 %v862, %v915
        %v921 = vmin.f32 %v863, %v917
        %v922 = vmax.f32 %v862, %v915
        %v923 = vmax.f32 %v863, %v917
        %926 = vrot.lane.b32.xlu0 %v886, 124
        %v927 = vpop.permute.xlu0 %926
        %928 = vrot.lane.b32.xlu0 %v887, 124
        %v929 = vpop.permute.xlu0 %928
        %v932 = vmin.f32 %v920, %v927
        %v933 = vmin.f32 %v921, %v929
        %v934 = vmax.f32 %v920, %v927
        %v935 = vmax.f32 %v921, %v929
        %938 = vrot.lane.b32.xlu0 %v898, 127
        %v939 = vpop.permute.xlu0 %938
        %940 = vrot.lane.b32.xlu0 %v899, 127
        %v941 = vpop.permute.xlu0 %940
        %v944 = vmin.f32 %v932, %v939
        %v945 = vmin.f32 %v933, %v941
        %v946 = vmax.f32 %v932, %v939
        %v947 = vmax.f32 %v933, %v941
        %950 = vrot.lane.b32.xlu0 %v908, 125
        %v951 = vpop.permute.xlu0 %950
        %952 = vrot.lane.b32.xlu0 %v909, 125
        %v953 = vpop.permute.xlu0 %952
        %v956 = vmax.f32 %v944, %v951
        %v957 = vmax.f32 %v945, %v953
        %960 = vrot.lane.b32.xlu0 %v910, 125
        %v961 = vpop.permute.xlu0 %960
        %962 = vrot.lane.b32.xlu0 %v911, 125
        %v963 = vpop.permute.xlu0 %962
        %v966 = vmin.f32 %v864, %v961
        %v967 = vmin.f32 %v865, %v963
        %v968 = vmax.f32 %v864, %v961
        %v969 = vmax.f32 %v865, %v963
        %972 = vrot.lane.b32.xlu0 %v968, 2
        %v973 = vpop.permute.xlu0 %972
        %974 = vrot.lane.b32.xlu0 %v969, 2
        %v975 = vpop.permute.xlu0 %974
        %v978 = vmin.f32 %v876, %v973
        %v979 = vmin.f32 %v877, %v975
        %v980 = vmax.f32 %v876, %v973
        %v981 = vmax.f32 %v877, %v975
        %984 = vrot.lane.b32.xlu0 %v980, 2
        %v985 = vpop.permute.xlu0 %984
        %986 = vrot.lane.b32.xlu0 %v981, 2
        %v987 = vpop.permute.xlu0 %986
        %v990 = vmin.f32 %v888, %v985
        %v991 = vmin.f32 %v889, %v987
        %v992 = vmax.f32 %v888, %v985
        %v993 = vmax.f32 %v889, %v987
        %996 = vrot.lane.b32.xlu0 %v992, 125
        %v997 = vpop.permute.xlu0 %996
        %998 = vrot.lane.b32.xlu0 %v993, 125
        %v999 = vpop.permute.xlu0 %998
        %v1002 = vmin.f32 %v900, %v997
        %v1003 = vmin.f32 %v901, %v999
        %v1004 = vmin.f32 %v966, %v922
        %v1005 = vmin.f32 %v967, %v923
        %v1006 = vmax.f32 %v966, %v922
        %v1007 = vmax.f32 %v967, %v923
        %1010 = vrot.lane.b32.xlu0 %v934, 2
        %v1011 = vpop.permute.xlu0 %1010
        %1012 = vrot.lane.b32.xlu0 %v935, 2
        %v1013 = vpop.permute.xlu0 %1012
        %v1016 = vmin.f32 %v978, %v1011
        %v1017 = vmin.f32 %v979, %v1013
        %v1018 = vmax.f32 %v978, %v1011
        %v1019 = vmax.f32 %v979, %v1013
        %1022 = vrot.lane.b32.xlu0 %v946, 4
        %v1023 = vpop.permute.xlu0 %1022
        %1024 = vrot.lane.b32.xlu0 %v947, 4
        %v1025 = vpop.permute.xlu0 %1024
        %v1028 = vmin.f32 %v990, %v1023
        %v1029 = vmin.f32 %v991, %v1025
        %v1030 = vmax.f32 %v990, %v1023
        %v1031 = vmax.f32 %v991, %v1025
        %1034 = vrot.lane.b32.xlu0 %v956, 1
        %v1035 = vpop.permute.xlu0 %1034
        %1036 = vrot.lane.b32.xlu0 %v957, 1
        %v1037 = vpop.permute.xlu0 %1036
        %v1040 = vmin.f32 %v1002, %v1035
        %v1041 = vmin.f32 %v1003, %v1037
        %v1042 = vmax.f32 %v1002, %v1035
        %v1043 = vmax.f32 %v1003, %v1037
        %1046 = vrot.lane.b32.xlu0 %v1016, 126
        %v1047 = vpop.permute.xlu0 %1046
        %1048 = vrot.lane.b32.xlu0 %v1017, 126
        %v1049 = vpop.permute.xlu0 %1048
        %v1052 = vmin.f32 %v1004, %v1047
        %v1053 = vmin.f32 %v1005, %v1049
        %v1054 = vmax.f32 %v1004, %v1047
        %v1055 = vmax.f32 %v1005, %v1049
        %1058 = vrot.lane.b32.xlu0 %v1028, 124
        %v1059 = vpop.permute.xlu0 %1058
        %1060 = vrot.lane.b32.xlu0 %v1029, 124
        %v1061 = vpop.permute.xlu0 %1060
        %v1064 = vmin.f32 %v1052, %v1059
        %v1065 = vmin.f32 %v1053, %v1061
        %v1066 = vmax.f32 %v1052, %v1059
        %v1067 = vmax.f32 %v1053, %v1061
        %1070 = vrot.lane.b32.xlu0 %v1040, 127
        %v1071 = vpop.permute.xlu0 %1070
        %1072 = vrot.lane.b32.xlu0 %v1041, 127
        %v1073 = vpop.permute.xlu0 %1072
        %v1076 = vmin.f32 %v1064, %v1071
        %v1077 = vmin.f32 %v1065, %v1073
        %v1078 = vmax.f32 %v1064, %v1071
        %v1079 = vmax.f32 %v1065, %v1073
        %1080 = vrot.lane.b32.xlu0 %v544, 125
        %v1081 = vpop.permute.xlu0 %1080
        %1082 = vrot.lane.b32.xlu0 %v545, 125
        %v1083 = vpop.permute.xlu0 %1082
        %v1086 = vmax.f32 %v1076, %v1081
        %v1087 = vmax.f32 %v1077, %v1083
        %v1088 = vmin.f32 %v1006, %v1086
        %v1089 = vmin.f32 %v1007, %v1087
        %v1090 = vmax.f32 %v1006, %v1086
        %v1091 = vmax.f32 %v1007, %v1087
        %1094 = vrot.lane.b32.xlu0 %v1090, 2
        %v1095 = vpop.permute.xlu0 %1094
        %1096 = vrot.lane.b32.xlu0 %v1091, 2
        %v1097 = vpop.permute.xlu0 %1096
        %v1100 = vmin.f32 %v1018, %v1095
        %v1101 = vmin.f32 %v1019, %v1097
        %v1102 = vmax.f32 %v1018, %v1095
        %v1103 = vmax.f32 %v1019, %v1097
        %1106 = vrot.lane.b32.xlu0 %v1102, 2
        %v1107 = vpop.permute.xlu0 %1106
        %1108 = vrot.lane.b32.xlu0 %v1103, 2
        %v1109 = vpop.permute.xlu0 %1108
        %v1112 = vmin.f32 %v1030, %v1107
        %v1113 = vmin.f32 %v1031, %v1109
        %v1114 = vmax.f32 %v1030, %v1107
        %v1115 = vmax.f32 %v1031, %v1109
        %1118 = vrot.lane.b32.xlu0 %v1114, 125
        %v1119 = vpop.permute.xlu0 %1118
        %1120 = vrot.lane.b32.xlu0 %v1115, 125
        %v1121 = vpop.permute.xlu0 %1120
        %v1124 = vmin.f32 %v1042, %v1119
        %v1125 = vmin.f32 %v1043, %v1121
        %v1126 = vmin.f32 %v1088, %v1054
        %v1127 = vmin.f32 %v1089, %v1055
        %v1128 = vmax.f32 %v1088, %v1054
        %v1129 = vmax.f32 %v1089, %v1055
        %1132 = vrot.lane.b32.xlu0 %v1066, 2
        %v1133 = vpop.permute.xlu0 %1132
        %1134 = vrot.lane.b32.xlu0 %v1067, 2
        %v1135 = vpop.permute.xlu0 %1134
        %v1138 = vmin.f32 %v1100, %v1133
        %v1139 = vmin.f32 %v1101, %v1135
        %v1140 = vmax.f32 %v1100, %v1133
        %v1141 = vmax.f32 %v1101, %v1135
        %1144 = vrot.lane.b32.xlu0 %v1078, 4
        %v1145 = vpop.permute.xlu0 %1144
        %1146 = vrot.lane.b32.xlu0 %v1079, 4
        %v1147 = vpop.permute.xlu0 %1146
        %v1150 = vmin.f32 %v1112, %v1145
        %v1151 = vmin.f32 %v1113, %v1147
        %v1152 = vmax.f32 %v1112, %v1145
        %v1153 = vmax.f32 %v1113, %v1147
        %v1154 = vmin.f32 %v1124, %v1081
        %v1155 = vmin.f32 %v1125, %v1083
        %v1156 = vmax.f32 %v1124, %v1081
        %v1157 = vmax.f32 %v1125, %v1083
        %1160 = vrot.lane.b32.xlu0 %v1138, 126
        %v1161 = vpop.permute.xlu0 %1160
        %1162 = vrot.lane.b32.xlu0 %v1139, 126
        %v1163 = vpop.permute.xlu0 %1162
        %v1166 = vmin.f32 %v1126, %v1161
        %v1167 = vmin.f32 %v1127, %v1163
        %v1168 = vmax.f32 %v1126, %v1161
        %v1169 = vmax.f32 %v1127, %v1163
        %1172 = vrot.lane.b32.xlu0 %v1150, 124
        %v1173 = vpop.permute.xlu0 %1172
        %1174 = vrot.lane.b32.xlu0 %v1151, 124
        %v1175 = vpop.permute.xlu0 %1174
        %v1178 = vmin.f32 %v1166, %v1173
        %v1179 = vmin.f32 %v1167, %v1175
        %v1180 = vmax.f32 %v1166, %v1173
        %v1181 = vmax.f32 %v1167, %v1175
        %1184 = vrot.lane.b32.xlu0 %v1154, 127
        %v1185 = vpop.permute.xlu0 %1184
        %1186 = vrot.lane.b32.xlu0 %v1155, 127
        %v1187 = vpop.permute.xlu0 %1186
        %v1190 = vmax.f32 %v1178, %v1185
        %v1191 = vmax.f32 %v1179, %v1187
        %1194 = vrot.lane.b32.xlu0 %v1156, 127
        %v1195 = vpop.permute.xlu0 %1194
        %1196 = vrot.lane.b32.xlu0 %v1157, 127
        %v1197 = vpop.permute.xlu0 %1196
        %v1200 = vmin.f32 %v1128, %v1195
        %v1201 = vmin.f32 %v1129, %v1197
        %v1202 = vmax.f32 %v1128, %v1195
        %v1203 = vmax.f32 %v1129, %v1197
        %1206 = vrot.lane.b32.xlu0 %v1202, 2
        %v1207 = vpop.permute.xlu0 %1206
        %1208 = vrot.lane.b32.xlu0 %v1203, 2
        %v1209 = vpop.permute.xlu0 %1208
        %v1212 = vmin.f32 %v1140, %v1207
        %v1213 = vmin.f32 %v1141, %v1209
        %v1214 = vmax.f32 %v1140, %v1207
        %v1215 = vmax.f32 %v1141, %v1209
        %1218 = vrot.lane.b32.xlu0 %v1214, 2
        %v1219 = vpop.permute.xlu0 %1218
        %1220 = vrot.lane.b32.xlu0 %v1215, 2
        %v1221 = vpop.permute.xlu0 %1220
        %v1224 = vmin.f32 %v1152, %v1219
        %v1225 = vmin.f32 %v1153, %v1221
        %v1226 = vld [vmem:[%s183 + $0x4] sm:$0xff]
        %v1227 = vld [vmem:[%s183 + $0xc] sm:$0xf]
        %v1228 = vmin.f32 %v1200, %v1168
        %v1229 = vmin.f32 %v1201, %v1169
        %v1230 = vmax.f32 %v1200, %v1168
        %v1231 = vmax.f32 %v1201, %v1169
        %1234 = vrot.lane.b32.xlu0 %v1180, 2
        %v1235 = vpop.permute.xlu0 %1234
        %1236 = vrot.lane.b32.xlu0 %v1181, 2
        %v1237 = vpop.permute.xlu0 %1236
        %v1240 = vmin.f32 %v1212, %v1235
        %v1241 = vmin.f32 %v1213, %v1237
        %v1242 = vmax.f32 %v1212, %v1235
        %v1243 = vmax.f32 %v1213, %v1237
        %1246 = vrot.lane.b32.xlu0 %v1190, 4
        %v1247 = vpop.permute.xlu0 %1246
        %1248 = vrot.lane.b32.xlu0 %v1191, 4
        %v1249 = vpop.permute.xlu0 %1248
        %v1252 = vmin.f32 %v1224, %v1247
        %v1253 = vmin.f32 %v1225, %v1249
        %v1254 = vmax.f32 %v1224, %v1247
        %v1255 = vmax.f32 %v1225, %v1249
        %1258 = vrot.lane.b32.xlu0 %v1240, 126
        %v1259 = vpop.permute.xlu0 %1258
        %1260 = vrot.lane.b32.xlu0 %v1241, 126
        %v1261 = vpop.permute.xlu0 %1260
        %v1264 = vmin.f32 %v1228, %v1259
        %v1265 = vmin.f32 %v1229, %v1261
        %v1266 = vmax.f32 %v1228, %v1259
        %v1267 = vmax.f32 %v1229, %v1261
        %1270 = vrot.lane.b32.xlu0 %v1252, 124
        %v1271 = vpop.permute.xlu0 %1270
        %1272 = vrot.lane.b32.xlu0 %v1253, 124
        %v1273 = vpop.permute.xlu0 %1272
        %v1276 = vmin.f32 %v1264, %v1271
        %v1277 = vmin.f32 %v1265, %v1273
        %v1278 = vmax.f32 %v1264, %v1271
        %v1279 = vmax.f32 %v1265, %v1273
        %v1280 = vmax.f32 %v1276, %v1226
        %v1281 = vmax.f32 %v1277, %v1227
        %v1282 = vmin.f32 %v1230, %v1280
        %v1283 = vmin.f32 %v1231, %v1281
        %v1284 = vmax.f32 %v1230, %v1280
        %v1285 = vmax.f32 %v1231, %v1281
        %1288 = vrot.lane.b32.xlu0 %v1284, 2
        %v1289 = vpop.permute.xlu0 %1288
        %1290 = vrot.lane.b32.xlu0 %v1285, 2
        %v1291 = vpop.permute.xlu0 %1290
        %v1294 = vmin.f32 %v1242, %v1289
        %v1295 = vmin.f32 %v1243, %v1291
        %v1296 = vmax.f32 %v1242, %v1289
        %v1297 = vmax.f32 %v1243, %v1291
        %1300 = vrot.lane.b32.xlu0 %v1296, 2
        %v1301 = vpop.permute.xlu0 %1300
        %1302 = vrot.lane.b32.xlu0 %v1297, 2
        %v1303 = vpop.permute.xlu0 %1302
        %v1306 = vmin.f32 %v1254, %v1301
        %v1307 = vmin.f32 %v1255, %v1303
        %v1308 = vmin.f32 %v1282, %v1266
        %v1309 = vmin.f32 %v1283, %v1267
        %v1310 = vmax.f32 %v1282, %v1266
        %v1311 = vmax.f32 %v1283, %v1267
        %1314 = vrot.lane.b32.xlu0 %v1278, 2
        %v1315 = vpop.permute.xlu0 %1314
        %1316 = vrot.lane.b32.xlu0 %v1279, 2
        %v1317 = vpop.permute.xlu0 %1316
        %v1320 = vmin.f32 %v1294, %v1315
        %v1321 = vmin.f32 %v1295, %v1317
        %v1322 = vmax.f32 %v1294, %v1315
        %v1323 = vmax.f32 %v1295, %v1317
        %1326 = vrot.lane.b32.xlu0 %v1226, 3
        %v1327 = vpop.permute.xlu0 %1326
        %1328 = vrot.lane.b32.xlu0 %v1227, 3
        %v1329 = vpop.permute.xlu0 %1328
        %v1332 = vmin.f32 %v1306, %v1327
        %v1333 = vmin.f32 %v1307, %v1329
        %v1334 = vmax.f32 %v1306, %v1327
        %v1335 = vmax.f32 %v1307, %v1329
        %1338 = vrot.lane.b32.xlu0 %v1320, 126
        %v1339 = vpop.permute.xlu0 %1338
        %1340 = vrot.lane.b32.xlu0 %v1321, 126
        %v1341 = vpop.permute.xlu0 %1340
        %v1344 = vmin.f32 %v1308, %v1339
        %v1345 = vmin.f32 %v1309, %v1341
        %v1346 = vmax.f32 %v1308, %v1339
        %v1347 = vmax.f32 %v1309, %v1341
        %1350 = vrot.lane.b32.xlu0 %v1332, 124
        %v1351 = vpop.permute.xlu0 %1350
        %1352 = vrot.lane.b32.xlu0 %v1333, 124
        %v1353 = vpop.permute.xlu0 %1352
        %v1356 = vmax.f32 %v1344, %v1351
        %v1357 = vmax.f32 %v1345, %v1353
        %1360 = vrot.lane.b32.xlu0 %v1334, 124
        %v1361 = vpop.permute.xlu0 %1360
        %1362 = vrot.lane.b32.xlu0 %v1335, 124
        %v1363 = vpop.permute.xlu0 %1362
        %v1366 = vmin.f32 %v1310, %v1361
        %v1367 = vmin.f32 %v1311, %v1363
        %v1368 = vmax.f32 %v1310, %v1361
        %v1369 = vmax.f32 %v1311, %v1363
        %1372 = vrot.lane.b32.xlu0 %v1368, 2
        %v1373 = vpop.permute.xlu0 %1372
        %1374 = vrot.lane.b32.xlu0 %v1369, 2
        %v1375 = vpop.permute.xlu0 %1374
        %v1378 = vmin.f32 %v1322, %v1373
        %v1379 = vmin.f32 %v1323, %v1375
        %v1380 = vmin.f32 %v1366, %v1346
        %v1381 = vmin.f32 %v1367, %v1347
        %v1382 = vmax.f32 %v1366, %v1346
        %v1383 = vmax.f32 %v1367, %v1347
        %1386 = vrot.lane.b32.xlu0 %v1356, 2
        %v1387 = vpop.permute.xlu0 %1386
        %1388 = vrot.lane.b32.xlu0 %v1357, 2
        %v1389 = vpop.permute.xlu0 %1388
        %v1392 = vmin.f32 %v1378, %v1387
        %v1393 = vmin.f32 %v1379, %v1389
        %v1394 = vmax.f32 %v1378, %v1387
        %v1395 = vmax.f32 %v1379, %v1389
        %1398 = vrot.lane.b32.xlu0 %v1392, 126
        %v1399 = vpop.permute.xlu0 %1398
        %1400 = vrot.lane.b32.xlu0 %v1393, 126
        %v1401 = vpop.permute.xlu0 %1400
        %v1404 = vmin.f32 %v1380, %v1399
        %v1405 = vmin.f32 %v1381, %v1401
        %v1406 = vmax.f32 %v1380, %v1399
        %v1407 = vmax.f32 %v1381, %v1401
        %1408 = vrot.lane.b32.xlu0 %v1226, 126
        %v1409 = vpop.permute.xlu0 %1408
        %1410 = vrot.lane.b32.xlu0 %v1227, 126
        %v1411 = vpop.permute.xlu0 %1410
        %v1414 = vmax.f32 %v1404, %v1409
        %v1415 = vmax.f32 %v1405, %v1411
        %v1416 = vmin.f32 %v1382, %v1414
        %v1417 = vmin.f32 %v1383, %v1415
        %v1418 = vmax.f32 %v1382, %v1414
        %v1419 = vmax.f32 %v1383, %v1415
        %1422 = vrot.lane.b32.xlu0 %v1418, 2
        %v1423 = vpop.permute.xlu0 %1422
        %1424 = vrot.lane.b32.xlu0 %v1419, 2
        %v1425 = vpop.permute.xlu0 %1424
        %v1428 = vmin.f32 %v1394, %v1423
        %v1429 = vmin.f32 %v1395, %v1425
        %v1430 = vmin.f32 %v1416, %v1406
        %v1431 = vmin.f32 %v1417, %v1407
        %v1432 = vmax.f32 %v1416, %v1406
        %v1433 = vmax.f32 %v1417, %v1407
        %1434 = vrot.lane.b32.xlu0 %v1226, 127
        %v1435 = vpop.permute.xlu0 %1434
        %1436 = vrot.lane.b32.xlu0 %v1227, 127
        %v1437 = vpop.permute.xlu0 %1436
        %v1440 = vmin.f32 %v1428, %v1435
        %v1441 = vmin.f32 %v1429, %v1437
        %v1442 = vmax.f32 %v1428, %v1435
        %v1443 = vmax.f32 %v1429, %v1437
        %1446 = vrot.lane.b32.xlu0 %v1440, 126
        %v1447 = vpop.permute.xlu0 %1446
        %1448 = vrot.lane.b32.xlu0 %v1441, 126
        %v1449 = vpop.permute.xlu0 %1448
        %v1452 = vmax.f32 %v1430, %v1447
        %v1453 = vmax.f32 %v1431, %v1449
        %1456 = vrot.lane.b32.xlu0 %v1442, 126
        %v1457 = vpop.permute.xlu0 %1456
        %1458 = vrot.lane.b32.xlu0 %v1443, 126
        %v1459 = vpop.permute.xlu0 %1458
        %v1462 = vmin.f32 %v1432, %v1457
        %v1463 = vmin.f32 %v1433, %v1459
        %v1464 = vmin.f32 %v1462, %v1452
        %v1465 = vmin.f32 %v1463, %v1453
        %v1466 = vmax.f32 %v1462, %v1452
        %v1467 = vmax.f32 %v1463, %v1453
        %1468 = vrot.lane.b32.xlu0 %v1226, 124
        %v1469 = vpop.permute.xlu0 %1468
        %1470 = vrot.lane.b32.xlu0 %v1227, 124
        %v1471 = vpop.permute.xlu0 %1470
        %v1474 = vmax.f32 %v1464, %v1469
        %v1475 = vmax.f32 %v1465, %v1471
        %v1476 = vmin.f32 %v1466, %v1474
        %v1477 = vmin.f32 %v1467, %v1475
        %s1478 = smul.u32 %s22, 8
        %s1479 = ssub.s32 %s1478, 2
        %v1480 = vlaneseq
        %v1481 = vshrl.u32 %v1480, 7
        %v1482 = vadd.s32 %v1481, 8
        %v1483 = vstv %s1479
        %v1484 = vadd.s32 %v1481, %v1483
        %v1485 = vadd.s32 %v1482, %v1483
        %v1486 = vlaneseq
        %v1487 = vand.u32 %v1486, 127
        %vm1488 = vcmp.ge.s32.totalorder %v1484, 0
        %vm1489 = vcmp.ge.s32.totalorder %v1485, 0
        %vm1490 = vcmp.lt.s32.totalorder %v1484, 16
        %vm1491 = vcmp.lt.s32.totalorder %v1485, 16
        %vm1492 = vmand %vm1488, %vm1490
        %vm1493 = vmand %vm1489, %vm1491
        %vm1494 = vcmp.ge.s32.totalorder %v1487, 2
        %vm1495 = vmand %vm1492, %vm1494
        %vm1496 = vmand %vm1493, %vm1494
        %vm1497 = vcmp.lt.s32.totalorder %v1487, 18
        %vm1498 = vmand %vm1495, %vm1497
        %vm1499 = vmand %vm1496, %vm1497
        %v1500 = vsel %vm1498, %v1476, 0.0
        %v1501 = vsel %vm1499, %v1477, 0.0
        %s1502 = sld [smem:[#allocation2]]
        %v1503 = vstv %s1502
        %v1504 = vmul.f32 %v1503, %v1500
        %s1505 = sld [smem:[#allocation2 + $0x1]]
        %v1506 = vstv %s1505
        %v1507 = vmul.f32 %v1506, %v1500
        %v1508 = vmul.f32 %v1506, %v1501
        %vm1511 = vcmask 1046528
        %v1512 = vrot.slane %v1507, 1
        %v1513 = vrot.slane %v1508, 1
        %v1514 = vsel %vm1511, %v1512, %v1513
        %v1516 = vadd.f32 %v1504, %v1514
        %s1517 = sld [smem:[#allocation2 + $0x2]]
        %v1518 = vstv %s1517
        %v1519 = vmul.f32 %v1518, %v1500
        %v1520 = vmul.f32 %v1518, %v1501
        %vm1523 = vcmask 1045504
        %v1524 = vrot.slane %v1519, 2
        %v1525 = vrot.slane %v1520, 2
        %v1526 = vsel %vm1523, %v1524, %v1525
        %v1528 = vadd.f32 %v1516, %v1526
        %s1529 = sld [smem:[#allocation2 + $0x3]]
        %v1530 = vstv %s1529
        %v1531 = vmul.f32 %v1530, %v1500
        %v1532 = vmul.f32 %v1530, %v1501
        %vm1535 = vcmask 1044480
        %v1536 = vrot.slane %v1531, 3
        %v1537 = vrot.slane %v1532, 3
        %v1538 = vsel %vm1535, %v1536, %v1537
        %v1540 = vadd.f32 %v1528, %v1538
        %s1541 = sld [smem:[#allocation2 + $0x4]]
        %v1542 = vstv %s1541
        %v1543 = vmul.f32 %v1542, %v1500
        %v1544 = vmul.f32 %v1542, %v1501
        %vm1547 = vcmask 1043456
        %v1548 = vrot.slane %v1543, 4
        %v1549 = vrot.slane %v1544, 4
        %v1550 = vsel %vm1547, %v1548, %v1549
        %v1552 = vadd.f32 %v1540, %v1550
        %v1553 = vmul.f32 %v1503, %v1552
        %v1554 = vmul.f32 %v1506, %v1552
        %1556 = vrot.lane.b32.xlu0 %v1554, 127
        %v1557 = vpop.permute.xlu0 %1556
        %v1559 = vadd.f32 %v1553, %v1557
        %v1560 = vmul.f32 %v1518, %v1552
        %1562 = vrot.lane.b32.xlu0 %v1560, 126
        %v1563 = vpop.permute.xlu0 %1562
        %v1565 = vadd.f32 %v1559, %v1563
        %v1566 = vmul.f32 %v1530, %v1552
        %1568 = vrot.lane.b32.xlu0 %v1566, 125
        %v1569 = vpop.permute.xlu0 %1568
        %v1571 = vadd.f32 %v1565, %v1569
        %v1572 = vmul.f32 %v1542, %v1552
        %1574 = vrot.lane.b32.xlu0 %v1572, 124
        %v1575 = vpop.permute.xlu0 %1574
        %v1577 = vadd.f32 %v1571, %v1575
        %vm1578 = vcmask 130048
        %1579 = vst.msk [vmem:[%s174] sm:$0xff] %vm1578, %v1577
        %s1580 = sand.u32 %s88, 1
        %s1581 = scalar_lea.sflag [#allocation3], %s1580
        %s1582 = sand.u32 %s88, 1
        %s1583 = smul.addr %s1582, 8
        %s1584 = scalar_lea.vmem [#allocation5], %s1583
        // Predicated region
        $region33: #{smoothing_layer.1} parent=27 // pred_check
          %p1585 = pneg %p98
        $region34: #{smoothing_layer.1} parent=27 // pred_check_branch
          %1587 = sbr.rel (%p1585) target = $region36
        $region35: #{smoothing_layer.1} parent=27 // pred_region
          %s1589 = ssub.s32 128, 128
          %1590 = vsyncadd %s1581, %s1589
          %s1591 = smul.addr %s21, 2
          %s1592 = sadd.s32 %s22, %s1591
          %s1593 = smul.addr %s1592, 128
          %s1594 = scalar_lea.hbm %s2, %s1593
          %s1596 = sshll.u32 %s1584, 4
          %s1597 = int_to_ptr.vmem [resolvable:$true] %s1596
          %1599 = dma.vmem_to_hbm [thread:$0]  %s1597, 128, %s1594, %s1581
        $region36: #{smoothing_layer.1} parent=27 // pred_fallthru
          _
      $region28: #{smoothing_layer.1} parent=5 // pred_fallthru
        _
      %p1600 = scmp.le.s32.totalorder 2, %s12
      // Predicated region
      $region37: #{smoothing_layer.1} parent=5 // pred_check
        %p1601 = pneg %p1600
      $region38: #{smoothing_layer.1} parent=5 // pred_check_branch
        %1603 = sbr.rel (%p1601) target = $region40
      $region39: #{smoothing_layer.1} parent=5 // pred_region
        %s1604 = ssub.s32 %s12, 2
        // Predicated region
        $region41: #{smoothing_layer.1} parent=39 // pred_check
          %p1605 = pneg %p104
        $region42: #{smoothing_layer.1} parent=39 // pred_check_branch
          %1607 = sbr.rel (%p1605) target = $region44
        $region43: #{smoothing_layer.1} parent=39 // pred_region
          %s1608 = sand.u32 %s89, 1
          %s1609 = scalar_lea.sflag [#allocation3], %s1608
          %s1610 = sand.u32 %s89, 1
          %s1611 = smul.addr %s1610, 8
          %s1612 = scalar_lea.vmem [#allocation5], %s1611
          %1613 = dma.done %s1609, 128
        $region44: #{smoothing_layer.1} parent=39 // pred_fallthru
          _
      $region40: #{smoothing_layer.1} parent=5 // pred_fallthru
        _
    $region6: #{smoothing_layer.1} parent=1 // loop_footer
      %s16 = sadd.s32 1, %s12
    $region7: #{smoothing_layer.1} parent=1 // loop_footer_branch
      %11 = sbr.rel target = $region3
    $region8: #{smoothing_layer.1} parent=1 // loop_exit
      _
    %1614 = vsyncpa [#allocation3], 1
    %s1615 = scalar_lea.sflag [#allocation3], 1
    %1616 = vsyncpa %s1615, 1
    %1617 = vsyncpa [#allocation4], 1
    %s1618 = scalar_lea.sflag [#allocation4], 1
    %1619 = vsyncpa %s1618, 1

</llo_original>
